<compile_context>
chip_gen: v6e
topology: v6e:2x2x1
jax: 0.10.0
libtpu: 0.0.40
codegen_flags: <defaults>
</compile_context>

<pallas_src>
import jax
import jax.numpy as jnp
from jax.experimental import pallas as pl
from jax.experimental.pallas import tpu as pltpu

# ----------------------------- fixed graph data -----------------------------
NODE_FEATURES = jnp.array(
    [[0.8, 0.1, 0.1, 600, 0],
     [0.8, 0.05, 0.15, 600, 0],
     [0.4, 0.3, 0.3, 500, 1],
     [0.6, 0.2, 0.2, 500, 2]], dtype=jnp.float32)

# edge_index is (2, E): row 0 = source, row 1 = destination
EDGE_INDEX = jnp.array(
    [[0, 2], [2, 0], [0, 3], [3, 0], [1, 2], [2, 1], [1, 3], [3, 1]],
    dtype=jnp.int32).T

N_NODES = 4
F_IN, F_HID, F_OUT = 5, 16, 1

# padded (TPU tile friendly) sizes -- zero padding keeps the matmuls exact
N_PAD = 8              # nodes per graph -> sublanes
F_IN_PAD = 8           # input features 5 -> 8
F_HID_LANES = 128      # hidden lanes (only first 16 are real)
F_OUT_PAD = 128        # output lanes (only column 0 is real)

# batching: B graphs per call, B_TILE graphs per grid step
B = 128                # total graphs per pallas_call
B_TILE = 32            # graphs per grid step
M_TILE = B_TILE * N_PAD            # 256 rows per step (fills MXU M dim)
M_TOTAL = B * N_PAD                # 1024 rows total


# ------------------------------- Pallas kernel ------------------------------
def gnn_kernel(a_ref, x_ref, w1_ref, b1_ref, w2_ref, b2_ref, o_ref):
    # a_ref : (M_TILE, M_TILE) block-diagonal A_norm (identical 8x8 blocks)
    # x_ref : (M_TILE, F_IN_PAD) this step's batch of node features
    a = a_ref[...]
    x = x_ref[...]

    # conv1: A @ (X @ W1) + b1, then ReLU.
    xw = jnp.dot(x, w1_ref[...], preferred_element_type=jnp.float32)   # (256,128)
    h = jnp.dot(a, xw, preferred_element_type=jnp.float32)             # (256,128)
    h = jnp.maximum(h + b1_ref[...], 0.0)

    # conv2: A @ (H @ W2) + b2.  W2 is zero-padded to K=128, so the full-lane
    # contraction is exact and stays a single aligned MXU pass (no lane slice).
    hw = jnp.dot(h, w2_ref[...], preferred_element_type=jnp.float32)   # (256,128)
    o_ref[...] = jnp.dot(a, hw, preferred_element_type=jnp.float32) + b2_ref[...]


def gnn_forward(a_bd, x_flat, w1, b1, w2, b2):
    """Batched forward.

    a_bd   : (M_TILE, M_TILE)  block-diagonal normalized adjacency (resident)
    x_flat : (M_TOTAL, F_IN_PAD) padded node features, batch flattened into M
    returns: (M_TOTAL, F_OUT_PAD) padded outputs
    """
    num_tiles = M_TOTAL // M_TILE
    resident = lambda shape: pl.BlockSpec(shape, lambda i: (0, 0))
    return pl.pallas_call(
        gnn_kernel,
        out_shape=jax.ShapeDtypeStruct((M_TOTAL, F_OUT_PAD), jnp.float32),
        grid=(num_tiles,),
        in_specs=[
            resident((M_TILE, M_TILE)),            # A_bd      (resident)
            pl.BlockSpec((M_TILE, F_IN_PAD), lambda i: (i, 0)),  # X (streamed)
            resident((F_IN_PAD, F_HID_LANES)),     # W1        (resident)
            resident((1, F_HID_LANES)),            # b1        (resident)
            resident((F_HID_LANES, F_OUT_PAD)),    # W2        (resident)
            resident((1, F_OUT_PAD)),              # b2        (resident)
        ],
        out_specs=pl.BlockSpec((M_TILE, F_OUT_PAD), lambda i: (i, 0)),
        compiler_params=pltpu.CompilerParams(
            dimension_semantics=("parallel",),     # v7x: split grid over 2 TCs
            vmem_limit_bytes=32 * 1024 * 1024,     # sized for v7x's 64 MiB VMEM
        ),
    )(a_bd, x_flat, w1, b1, w2, b2)


# -------------------------------- glue (JAX) --------------------------------
def build_normalized_adjacency(edge_index, num_nodes):
    """Dense D^-1/2 (A + I) D^-1/2 with A[dst, src] = 1 for each edge."""
    src, dst = edge_index[0], edge_index[1]
    a = jnp.zeros((num_nodes, num_nodes), jnp.float32)
    a = a.at[dst, src].add(1.0)
    a = a + jnp.eye(num_nodes, dtype=jnp.float32)          # self loops
    deg = jnp.sum(a, axis=1)
    dinv = jnp.where(deg > 0, 1.0 / jnp.sqrt(deg), 0.0)
    return dinv[:, None] * a * dinv[None, :]


def glorot(key, shape):
    limit = jnp.sqrt(6.0 / (shape[0] + shape[1]))
    return jax.random.uniform(key, shape, jnp.float32, -limit, limit)


def pad2d(x, rows, cols):
    return jnp.zeros((rows, cols), jnp.float32).at[: x.shape[0], : x.shape[1]].set(x)


if __name__ == "__main__":
    key = jax.random.PRNGKey(0)
    k1, k2, k3 = jax.random.split(key, 3)

    # GCNConv params (glorot weights, zero bias) -- deterministic, synthetic.
    w1 = glorot(k1, (F_IN, F_HID))
    b1 = jnp.zeros((F_HID,), jnp.float32)
    w2 = glorot(k2, (F_HID, F_OUT))
    b2 = jnp.zeros((F_OUT,), jnp.float32)

    # Normalized adjacency of the fixed 4-node graph (same structure for every
    # graph in the batch, as in the module's Data object).
    a_norm = build_normalized_adjacency(EDGE_INDEX, N_NODES)        # (4, 4)

    # Batch of B graphs: graph 0 is the module's node_features, the rest are
    # random features with comparable scale.
    feat_scale = jnp.array([1.0, 1.0, 1.0, 600.0, 2.0], jnp.float32)
    x_rand = jax.random.uniform(k3, (B - 1, N_NODES, F_IN), jnp.float32) * feat_scale
    x_all = jnp.concatenate([NODE_FEATURES[None], x_rand], axis=0)  # (B, 4, 5)

    # ---- pad / pack for the kernel (zero padding is exact here) ----
    a_block = pad2d(a_norm, N_PAD, N_PAD)                           # (8, 8)
    a_bd = jnp.kron(jnp.eye(B_TILE, dtype=jnp.float32), a_block)    # (256, 256)

    x_pad = jnp.zeros((B, N_PAD, F_IN_PAD), jnp.float32)
    x_pad = x_pad.at[:, :N_NODES, :F_IN].set(x_all)
    x_flat = x_pad.reshape(M_TOTAL, F_IN_PAD)                       # (1024, 8)

    w1_p = pad2d(w1, F_IN_PAD, F_HID_LANES)                         # (8, 128)
    b1_p = pad2d(b1[None, :], 1, F_HID_LANES)                       # (1, 128)
    w2_p = pad2d(w2, F_HID_LANES, F_OUT_PAD)                        # (128, 128), rows>=16 zero
    b2_p = pad2d(b2[None, :], 1, F_OUT_PAD)                         # (1, 128)

    out_pad = gnn_forward(a_bd, x_flat, w1_p, b1_p, w2_p, b2_p)     # (1024, 128)
    out = out_pad.reshape(B, N_PAD, F_OUT_PAD)[:, :N_NODES, :F_OUT] # (B, 4, 1)
    jax.block_until_ready(out)

    # pure-JAX reference (per graph, identical to the PyTorch module's forward)
    def ref_forward(xg):
        h = jnp.maximum(a_norm @ (xg @ w1) + b1[None, :], 0.0)
        return a_norm @ (h @ w2) + b2[None, :]

    ref = jax.vmap(ref_forward)(x_all)                              # (B, 4, 1)
    assert jnp.allclose(out, ref, atol=1e-3, rtol=1e-4), (out[0], ref[0])

    print("KERNEL_OK")
</pallas_src>

<mosaic_0001>
module attributes {stable_mosaic.version = 11 : i64} {
  func.func @gnn_kernel(%arg0: i32, %arg1: memref<256x256xf32, #tpu.memory_space<vmem>>, %arg2: memref<256x8xf32, #tpu.memory_space<vmem>>, %arg3: memref<8x128xf32, #tpu.memory_space<vmem>>, %arg4: memref<1x128xf32, #tpu.memory_space<vmem>>, %arg5: memref<128x128xf32, #tpu.memory_space<vmem>>, %arg6: memref<1x128xf32, #tpu.memory_space<vmem>>, %arg7: memref<256x128xf32, #tpu.memory_space<vmem>>) attributes {dimension_semantics = [#tpu.dimension_semantics<parallel>], iteration_bounds = array<i64: 4>, scalar_prefetch = 0 : i64, scratch_operands = 0 : i64, tpu.core_type = #tpu.core_type<tc>, window_params = [{pipeline_mode = #tpu.pipeline_mode<synchronous>, transform_indices = @transform_0, window_bounds = array<i64: 256, 256>}, {transform_indices = @transform_1, window_bounds = array<i64: 256, 8>}, {pipeline_mode = #tpu.pipeline_mode<synchronous>, transform_indices = @transform_2, window_bounds = array<i64: 8, 128>}, {pipeline_mode = #tpu.pipeline_mode<synchronous>, transform_indices = @transform_3, window_bounds = array<i64: 1, 128>}, {pipeline_mode = #tpu.pipeline_mode<synchronous>, transform_indices = @transform_4, window_bounds = array<i64: 128, 128>}, {pipeline_mode = #tpu.pipeline_mode<synchronous>, transform_indices = @transform_5, window_bounds = array<i64: 1, 128>}, {transform_indices = @transform_6, window_bounds = array<i64: 256, 128>}]} {
    %c0 = arith.constant 0 : index
    %c0_0 = arith.constant 0 : index
    %0 = vector.load %arg1[%c0, %c0_0] : memref<256x256xf32, #tpu.memory_space<vmem>>, vector<256x256xf32>
    %c0_1 = arith.constant 0 : index
    %c0_2 = arith.constant 0 : index
    %1 = vector.load %arg2[%c0_1, %c0_2] : memref<256x8xf32, #tpu.memory_space<vmem>>, vector<256x8xf32>
    %c0_3 = arith.constant 0 : index
    %c0_4 = arith.constant 0 : index
    %2 = vector.load %arg3[%c0_3, %c0_4] : memref<8x128xf32, #tpu.memory_space<vmem>>, vector<8x128xf32>
    %cst = arith.constant dense<0.000000e+00> : vector<256x128xf32>
    %3 = tpu.matmul %1, %2, %cst {dimension_numbers = #tpu.dot_dimension_numbers<[1], [0], [0], [1], [0, 0, 1, 1], [], []>} : vector<256x8xf32>, vector<8x128xf32>, vector<256x128xf32> -> vector<256x128xf32>
    %cst_5 = arith.constant dense<0.000000e+00> : vector<256x128xf32>
    %4 = tpu.matmul %0, %3, %cst_5 {dimension_numbers = #tpu.dot_dimension_numbers<[1], [0], [0], [1], [0, 0, 1, 1], [], []>} : vector<256x256xf32>, vector<256x128xf32>, vector<256x128xf32> -> vector<256x128xf32>
    %c0_6 = arith.constant 0 : index
    %c0_7 = arith.constant 0 : index
    %5 = vector.load %arg4[%c0_6, %c0_7] : memref<1x128xf32, #tpu.memory_space<vmem>>, vector<1x128xf32>
    %6 = vector.broadcast %5 : vector<1x128xf32> to vector<256x128xf32>
    %7 = arith.addf %4, %6 : vector<256x128xf32>
    %cst_8 = arith.constant 0.000000e+00 : f32
    %8 = vector.broadcast %cst_8 : f32 to vector<256x128xf32>
    %9 = arith.maximumf %7, %8 : vector<256x128xf32>
    %c0_9 = arith.constant 0 : index
    %c0_10 = arith.constant 0 : index
    %10 = vector.load %arg5[%c0_9, %c0_10] : memref<128x128xf32, #tpu.memory_space<vmem>>, vector<128x128xf32>
    %cst_11 = arith.constant dense<0.000000e+00> : vector<256x128xf32>
    %11 = tpu.matmul %9, %10, %cst_11 {dimension_numbers = #tpu.dot_dimension_numbers<[1], [0], [0], [1], [0, 0, 1, 1], [], []>} : vector<256x128xf32>, vector<128x128xf32>, vector<256x128xf32> -> vector<256x128xf32>
    %cst_12 = arith.constant dense<0.000000e+00> : vector<256x128xf32>
    %12 = tpu.matmul %0, %11, %cst_12 {dimension_numbers = #tpu.dot_dimension_numbers<[1], [0], [0], [1], [0, 0, 1, 1], [], []>} : vector<256x256xf32>, vector<256x128xf32>, vector<256x128xf32> -> vector<256x128xf32>
    %c0_13 = arith.constant 0 : index
    %c0_14 = arith.constant 0 : index
    %13 = vector.load %arg6[%c0_13, %c0_14] : memref<1x128xf32, #tpu.memory_space<vmem>>, vector<1x128xf32>
    %14 = vector.broadcast %13 : vector<1x128xf32> to vector<256x128xf32>
    %15 = arith.addf %12, %14 : vector<256x128xf32>
    %c0_15 = arith.constant 0 : index
    %c0_16 = arith.constant 0 : index
    %16 = vector.load %arg7[%c0_15, %c0_16] : memref<256x128xf32, #tpu.memory_space<vmem>>, vector<256x128xf32>
    tpu.vector_store %arg7[%c0_15, %c0_16], %15 {strides = array<i32>} : memref<256x128xf32, #tpu.memory_space<vmem>>, vector<256x128xf32>,
    return
  }
  func.func @transform_0(%arg0: i32) -> (i32, i32) {
    %c0_i32 = arith.constant 0 : i32
    %c0_i32_0 = arith.constant 0 : i32
    %c0_i32_1 = arith.constant 0 : i32
    return %c0_i32, %c0_i32_0 : i32, i32
  }
  func.func @transform_1(%arg0: i32) -> (i32, i32) {
    %c0_i32 = arith.constant 0 : i32
    %c0_i32_0 = arith.constant 0 : i32
    return %arg0, %c0_i32 : i32, i32
  }
  func.func @transform_2(%arg0: i32) -> (i32, i32) {
    %c0_i32 = arith.constant 0 : i32
    %c0_i32_0 = arith.constant 0 : i32
    %c0_i32_1 = arith.constant 0 : i32
    return %c0_i32, %c0_i32_0 : i32, i32
  }
  func.func @transform_3(%arg0: i32) -> (i32, i32) {
    %c0_i32 = arith.constant 0 : i32
    %c0_i32_0 = arith.constant 0 : i32
    %c0_i32_1 = arith.constant 0 : i32
    return %c0_i32, %c0_i32_0 : i32, i32
  }
  func.func @transform_4(%arg0: i32) -> (i32, i32) {
    %c0_i32 = arith.constant 0 : i32
    %c0_i32_0 = arith.constant 0 : i32
    %c0_i32_1 = arith.constant 0 : i32
    return %c0_i32, %c0_i32_0 : i32, i32
  }
  func.func @transform_5(%arg0: i32) -> (i32, i32) {
    %c0_i32 = arith.constant 0 : i32
    %c0_i32_0 = arith.constant 0 : i32
    %c0_i32_1 = arith.constant 0 : i32
    return %c0_i32, %c0_i32_0 : i32, i32
  }
  func.func @transform_6(%arg0: i32) -> (i32, i32) {
    %c0_i32 = arith.constant 0 : i32
    %c0_i32_0 = arith.constant 0 : i32
    return %arg0, %c0_i32 : i32, i32
  }
}

</mosaic_0001>

<llo_original>
// kernel: tpu_custom_call.1
$region0: #{tpu_custom_call.1}
  #allocation0 [shape = 'u32[]', space=smem, size = 0x4, offset = 0x4, fixed_abs, tag = 'smem constant byte address 0x4 - core index']
  #allocation1 [shape = 'u32[144,128]{1,0:T(1,128)}', space=vmem, size = 0x12000, scoped, tag = 'internal scratch']
  %s0 = inlined_call_operand.vmem [shape: f32[256,256], index: 0, kind: input, shape index: {}]
  %s1 = inlined_call_operand.vmem [shape: f32[1024,8], index: 1, kind: input, shape index: {}]
  %s2 = inlined_call_operand.vmem [shape: f32[8,128], index: 2, kind: input, shape index: {}]
  %s3 = inlined_call_operand.vmem [shape: f32[1,128], index: 3, kind: input, shape index: {}]
  %s4 = inlined_call_operand.vmem [shape: f32[128,128], index: 4, kind: input, shape index: {}]
  %s5 = inlined_call_operand.vmem [shape: f32[1,128], index: 5, kind: input, shape index: {}]
  %s6 = inlined_call_operand.hbm [shape: f32[1024,128], index: 6, kind: output, shape index: {}]
  %s7 = sld [smem:[#allocation0]]
  $region57: #{tpu_custom_call.1} parent=0
    _
  %s9 = ssub.s32 1, %s7
  %s10 = scalar_select 0, %s9, %s7
  $region1: #{tpu_custom_call.1} parent=0
    #allocation2 [shape = 'u8[262144]{0}', space=vmem, size = 0x40000, scoped, tag = 'output window, operand 0']
    #allocation3 [shape = 's32[2]{0}', space=sflag, size = 0x8, scoped, tag = 'scoped memory for tpu_custom_call.1']
    %11 = vsyncpa [#allocation3], 0
    %s12 = scalar_lea.sflag [#allocation3], 1
    %13 = vsyncpa %s12, 0
    loop: start=0, step=1, limit=6
    $region2: #{tpu_custom_call.1} parent=1 // loop_pre_header
      _
    $region3: #{tpu_custom_call.1} parent=1 // loop_header
      %s15 = sphi 0, %s19
      %p16 = scmp.ge.s32.totalorder %s15, 6
      %s23 = sphi 0, %s23
      %s25 = sphi 0, %s23
      %s26 = sphi 0, %s25
      %s40 = sphi 0, %s26
      %s46 = sphi 0, %s48
      %s49 = sphi 0, %s46
      %s50 = sphi 0, %s49
      %s66 = sphi 0, %s50
      %s70 = sphi 0, %s70
      %s72 = sphi 0, %s70
      %s73 = sphi 0, %s72
      %s87 = sphi 0, %s73
      %s91 = sphi 0, %s91
      %s93 = sphi 0, %s91
      %s94 = sphi 0, %s93
      %s108 = sphi 0, %s94
      %s112 = sphi 0, %s112
      %s114 = sphi 0, %s112
      %s115 = sphi 0, %s114
      %s129 = sphi 0, %s115
      %s133 = sphi 0, %s133
      %s135 = sphi 0, %s133
      %s136 = sphi 0, %s135
      %s150 = sphi 0, %s136
      %s156 = sphi 0, %s158
      %s159 = sphi 0, %s156
      %s160 = sphi 0, %s159
      %s176 = sphi 0, %s160
    $region4: #{tpu_custom_call.1} parent=1 // loop_header_branch
      %18 = sbr.rel (%p16) target = $region8
    $region5: #{tpu_custom_call.1} parent=1 // loop_body
      %s20 = ssub.s32 %s15, 1
      %s21 = ssub.s32 %s15, 2
      %s22 = sadd.s32 %s15, 1
      %s24 = sadd.s32 %s23, 1
      %p27 = scmp.eq.s32.totalorder %s15, 3
      %p28 = scmp.ne.s32.totalorder %s23, %s25
      %p29 = scmp.eq.s32.totalorder %s15, 0
      %p30 = por %p28, %p29
      %p31 = scmp.ne.s32.totalorder %s23, %s25
      %p32 = scmp.eq.s32.totalorder %s20, 3
      %p33 = por %p31, %p32
      %p34 = scmp.ne.s32.totalorder %s25, %s26
      %p35 = scmp.eq.s32.totalorder %s20, 0
      %p36 = por %p34, %p35
      %p37 = scmp.ne.s32.totalorder %s25, %s26
      %p38 = scmp.eq.s32.totalorder %s21, 3
      %p39 = por %p37, %p38
      %p41 = scmp.ne.s32.totalorder %s26, %s40
      %p42 = scmp.eq.s32.totalorder %s21, 0
      %p43 = por %p41, %p42
      %s44 = ssub.s32 %s15, %s22
      %p45 = scmp.eq.s32.totalorder %s44, 0
      %s47 = sadd.s32 %s46, 1
      %s48 = scalar_select %p45, %s46, %s47
      %p51 = pneg %p45
      %p52 = scmp.eq.s32.totalorder %s15, 3
      %p53 = por %p51, %p52
      %p54 = scmp.ne.s32.totalorder %s46, %s49
      %p55 = scmp.eq.s32.totalorder %s15, 0
      %p56 = por %p54, %p55
      %p57 = scmp.ne.s32.totalorder %s46, %s49
      %p58 = scmp.eq.s32.totalorder %s20, 3
      %p59 = por %p57, %p58
      %p60 = scmp.ne.s32.totalorder %s49, %s50
      %p61 = scmp.eq.s32.totalorder %s20, 0
      %p62 = por %p60, %p61
      %p63 = scmp.ne.s32.totalorder %s49, %s50
      %p64 = scmp.eq.s32.totalorder %s21, 3
      %p65 = por %p63, %p64
      %p67 = scmp.ne.s32.totalorder %s50, %s66
      %p68 = scmp.eq.s32.totalorder %s21, 0
      %p69 = por %p67, %p68
      %s71 = sadd.s32 %s70, 1
      %p74 = scmp.eq.s32.totalorder %s15, 3
      %p75 = scmp.ne.s32.totalorder %s70, %s72
      %p76 = scmp.eq.s32.totalorder %s15, 0
      %p77 = por %p75, %p76
      %p78 = scmp.ne.s32.totalorder %s70, %s72
      %p79 = scmp.eq.s32.totalorder %s20, 3
      %p80 = por %p78, %p79
      %p81 = scmp.ne.s32.totalorder %s72, %s73
      %p82 = scmp.eq.s32.totalorder %s20, 0
      %p83 = por %p81, %p82
      %p84 = scmp.ne.s32.totalorder %s72, %s73
      %p85 = scmp.eq.s32.totalorder %s21, 3
      %p86 = por %p84, %p85
      %p88 = scmp.ne.s32.totalorder %s73, %s87
      %p89 = scmp.eq.s32.totalorder %s21, 0
      %p90 = por %p88, %p89
      %s92 = sadd.s32 %s91, 1
      %p95 = scmp.eq.s32.totalorder %s15, 3
      %p96 = scmp.ne.s32.totalorder %s91, %s93
      %p97 = scmp.eq.s32.totalorder %s15, 0
      %p98 = por %p96, %p97
      %p99 = scmp.ne.s32.totalorder %s91, %s93
      %p100 = scmp.eq.s32.totalorder %s20, 3
      %p101 = por %p99, %p100
      %p102 = scmp.ne.s32.totalorder %s93, %s94
      %p103 = scmp.eq.s32.totalorder %s20, 0
      %p104 = por %p102, %p103
      %p105 = scmp.ne.s32.totalorder %s93, %s94
      %p106 = scmp.eq.s32.totalorder %s21, 3
      %p107 = por %p105, %p106
      %p109 = scmp.ne.s32.totalorder %s94, %s108
      %p110 = scmp.eq.s32.totalorder %s21, 0
      %p111 = por %p109, %p110
      %s113 = sadd.s32 %s112, 1
      %p116 = scmp.eq.s32.totalorder %s15, 3
      %p117 = scmp.ne.s32.totalorder %s112, %s114
      %p118 = scmp.eq.s32.totalorder %s15, 0
      %p119 = por %p117, %p118
      %p120 = scmp.ne.s32.totalorder %s112, %s114
      %p121 = scmp.eq.s32.totalorder %s20, 3
      %p122 = por %p120, %p121
      %p123 = scmp.ne.s32.totalorder %s114, %s115
      %p124 = scmp.eq.s32.totalorder %s20, 0
      %p125 = por %p123, %p124
      %p126 = scmp.ne.s32.totalorder %s114, %s115
      %p127 = scmp.eq.s32.totalorder %s21, 3
      %p128 = por %p126, %p127
      %p130 = scmp.ne.s32.totalorder %s115, %s129
      %p131 = scmp.eq.s32.totalorder %s21, 0
      %p132 = por %p130, %p131
      %s134 = sadd.s32 %s133, 1
      %p137 = scmp.eq.s32.totalorder %s15, 3
      %p138 = scmp.ne.s32.totalorder %s133, %s135
      %p139 = scmp.eq.s32.totalorder %s15, 0
      %p140 = por %p138, %p139
      %p141 = scmp.ne.s32.totalorder %s133, %s135
      %p142 = scmp.eq.s32.totalorder %s20, 3
      %p143 = por %p141, %p142
      %p144 = scmp.ne.s32.totalorder %s135, %s136
      %p145 = scmp.eq.s32.totalorder %s20, 0
      %p146 = por %p144, %p145
      %p147 = scmp.ne.s32.totalorder %s135, %s136
      %p148 = scmp.eq.s32.totalorder %s21, 3
      %p149 = por %p147, %p148
      %p151 = scmp.ne.s32.totalorder %s136, %s150
      %p152 = scmp.eq.s32.totalorder %s21, 0
      %p153 = por %p151, %p152
      %s154 = ssub.s32 %s15, %s22
      %p155 = scmp.eq.s32.totalorder %s154, 0
      %s157 = sadd.s32 %s156, 1
      %s158 = scalar_select %p155, %s156, %s157
      %p161 = pneg %p155
      %p162 = scmp.eq.s32.totalorder %s15, 3
      %p163 = por %p161, %p162
      %p164 = scmp.ne.s32.totalorder %s156, %s159
      %p165 = scmp.eq.s32.totalorder %s15, 0
      %p166 = por %p164, %p165
      %p167 = scmp.ne.s32.totalorder %s156, %s159
      %p168 = scmp.eq.s32.totalorder %s20, 3
      %p169 = por %p167, %p168
      %p170 = scmp.ne.s32.totalorder %s159, %s160
      %p171 = scmp.eq.s32.totalorder %s20, 0
      %p172 = por %p170, %p171
      %p173 = scmp.ne.s32.totalorder %s159, %s160
      %p174 = scmp.eq.s32.totalorder %s21, 3
      %p175 = por %p173, %p174
      %p177 = scmp.ne.s32.totalorder %s160, %s176
      %p178 = scmp.eq.s32.totalorder %s21, 0
      %p179 = por %p177, %p178
      %p180 = scmp.le.s32.totalorder 1, %s15
      %p181 = scmp.lt.s32.totalorder %s15, 5
      %p182 = pnand %p180, %p181
      %p183 = pneg %p182
      // Predicated region
      $region9: #{tpu_custom_call.1} parent=5 // pred_check
        _
      $region10: #{tpu_custom_call.1} parent=5 // pred_check_branch
        %185 = sbr.rel (%p182) target = $region12
      $region11: #{tpu_custom_call.1} parent=5 // pred_region
        %s186 = ssub.s32 %s15, 1
        // Predicated region
        $region13: #{tpu_custom_call.1} parent=11 // pred_check
          %p187 = pneg %p36
        $region14: #{tpu_custom_call.1} parent=11 // pred_check_branch
          %189 = sbr.rel (%p187) target = $region16
        $region15: #{tpu_custom_call.1} parent=11 // pred_region
          _
        $region16: #{tpu_custom_call.1} parent=11 // pred_fallthru
          _
        // Predicated region
        $region17: #{tpu_custom_call.1} parent=11 // pred_check
          %p190 = pneg %p83
        $region18: #{tpu_custom_call.1} parent=11 // pred_check_branch
          %192 = sbr.rel (%p190) target = $region20
        $region19: #{tpu_custom_call.1} parent=11 // pred_region
          _
        $region20: #{tpu_custom_call.1} parent=11 // pred_fallthru
          _
        // Predicated region
        $region21: #{tpu_custom_call.1} parent=11 // pred_check
          %p193 = pneg %p104
        $region22: #{tpu_custom_call.1} parent=11 // pred_check_branch
          %195 = sbr.rel (%p193) target = $region24
        $region23: #{tpu_custom_call.1} parent=11 // pred_region
          _
        $region24: #{tpu_custom_call.1} parent=11 // pred_fallthru
          _
        // Predicated region
        $region25: #{tpu_custom_call.1} parent=11 // pred_check
          %p196 = pneg %p125
        $region26: #{tpu_custom_call.1} parent=11 // pred_check_branch
          %198 = sbr.rel (%p196) target = $region28
        $region27: #{tpu_custom_call.1} parent=11 // pred_region
          _
        $region28: #{tpu_custom_call.1} parent=11 // pred_fallthru
          _
        // Predicated region
        $region29: #{tpu_custom_call.1} parent=11 // pred_check
          %p199 = pneg %p146
        $region30: #{tpu_custom_call.1} parent=11 // pred_check_branch
          %201 = sbr.rel (%p199) target = $region32
        $region31: #{tpu_custom_call.1} parent=11 // pred_region
          _
        $region32: #{tpu_custom_call.1} parent=11 // pred_fallthru
          _
      $region12: #{tpu_custom_call.1} parent=5 // pred_fallthru
        _
      %p202 = scmp.lt.s32.totalorder %s15, 4
      // Predicated region
      $region33: #{tpu_custom_call.1} parent=5 // pred_check
        %p203 = pneg %p202
      $region34: #{tpu_custom_call.1} parent=5 // pred_check_branch
        %205 = sbr.rel (%p203) target = $region36
      $region35: #{tpu_custom_call.1} parent=5 // pred_region
        // Predicated region
        $region37: #{tpu_custom_call.1} parent=35 // pred_check
          %p206 = pneg %p56
        $region38: #{tpu_custom_call.1} parent=35 // pred_check_branch
          %208 = sbr.rel (%p206) target = $region40
        $region39: #{tpu_custom_call.1} parent=35 // pred_region
          %s209 = smul.u32 32, %s15
          %p210 = scmp.lt.s32.totalorder %s209, 127
          %s211 = scalar_select %p210, %s209, 127
          %s212 = smul.addr %s211, 8
          %s213 = scalar_lea.vmem %s1, %s212
          %s214 = smul.u32 32, %s15
        $region40: #{tpu_custom_call.1} parent=35 // pred_fallthru
          _
      $region36: #{tpu_custom_call.1} parent=5 // pred_fallthru
        _
      %p215 = scmp.le.s32.totalorder 1, %s15
      %p216 = scmp.lt.s32.totalorder %s15, 5
      %p217 = pnand %p215, %p216
      %p218 = pneg %p217
      // Predicated region
      $region41: #{tpu_custom_call.1} parent=5 // pred_check
        _
      $region42: #{tpu_custom_call.1} parent=5 // pred_check_branch
        %220 = sbr.rel (%p217) target = $region44
      $region43: #{tpu_custom_call.1} parent=5 // pred_region
        %s221 = ssub.s32 %s15, 1
        %p222 = pneg %p36
        %p223 = pneg %p33
        %s224 = smul.u32 32, %s20
        %p225 = scmp.lt.s32.totalorder %s224, 127
        %s226 = scalar_select %p225, %s224, 127
        %s227 = smul.addr %s226, 8
        %s228 = scalar_lea.vmem %s1, %s227
        %p229 = pneg %p62
        %p230 = pneg %p59
        %p231 = pneg %p83
        %p232 = pneg %p80
        %p233 = pneg %p104
        %p234 = pneg %p101
        %p235 = pneg %p125
        %p236 = pneg %p122
        %p237 = pneg %p146
        %p238 = pneg %p143
        %p239 = pneg %p172
        %p240 = pneg %p169
        %s241 = sand.u32 %s159, 1
        %s242 = scalar_lea.sflag [#allocation3], %s241
        %s243 = sand.u32 %s159, 1
        %s244 = smul.addr %s243, 256
        %s245 = scalar_lea.vmem [#allocation2], %s244
        %s246 = smul.u32 32, %s20
        %p247 = scmp.lt.s32.totalorder %s246, 127
        %s248 = scalar_select %p247, %s246, 127
        %s249 = smul.addr %s248, 8
        %s250 = scalar_lea.vmem %s1, %s249
        %s251 = smul.u32 32, %s20
        %s252 = smul.u32 32, %s20
        %v253 = vld [vmem:[%s0] sm:$0xff]
        %v254 = vld [vmem:[%s0 + $0x8] sm:$0xff]
        %v255 = vld [vmem:[%s0 + $0x10] sm:$0xff]
        %v256 = vld [vmem:[%s0 + $0x18] sm:$0xff]
        %v257 = vld [vmem:[%s0 + $0x20] sm:$0xff]
        %v258 = vld [vmem:[%s0 + $0x28] sm:$0xff]
        %v259 = vld [vmem:[%s0 + $0x30] sm:$0xff]
        %v260 = vld [vmem:[%s0 + $0x38] sm:$0xff]
        %v261 = vld [vmem:[%s0 + $0x40] sm:$0xff]
        %v262 = vld [vmem:[%s0 + $0x48] sm:$0xff]
        %v263 = vld [vmem:[%s0 + $0x50] sm:$0xff]
        %v264 = vld [vmem:[%s0 + $0x58] sm:$0xff]
        %v265 = vld [vmem:[%s0 + $0x60] sm:$0xff]
        %v266 = vld [vmem:[%s0 + $0x68] sm:$0xff]
        %v267 = vld [vmem:[%s0 + $0x70] sm:$0xff]
        %v268 = vld [vmem:[%s0 + $0x78] sm:$0xff]
        %v269 = vld [vmem:[%s0 + $0x80] sm:$0xff]
        %v270 = vld [vmem:[%s0 + $0x88] sm:$0xff]
        %v271 = vld [vmem:[%s0 + $0x90] sm:$0xff]
        %v272 = vld [vmem:[%s0 + $0x98] sm:$0xff]
        %v273 = vld [vmem:[%s0 + $0xa0] sm:$0xff]
        %v274 = vld [vmem:[%s0 + $0xa8] sm:$0xff]
        %v275 = vld [vmem:[%s0 + $0xb0] sm:$0xff]
        %v276 = vld [vmem:[%s0 + $0xb8] sm:$0xff]
        %v277 = vld [vmem:[%s0 + $0xc0] sm:$0xff]
        %v278 = vld [vmem:[%s0 + $0xc8] sm:$0xff]
        %v279 = vld [vmem:[%s0 + $0xd0] sm:$0xff]
        %v280 = vld [vmem:[%s0 + $0xd8] sm:$0xff]
        %v281 = vld [vmem:[%s0 + $0xe0] sm:$0xff]
        %v282 = vld [vmem:[%s0 + $0xe8] sm:$0xff]
        %v283 = vld [vmem:[%s0 + $0xf0] sm:$0xff]
        %v284 = vld [vmem:[%s0 + $0xf8] sm:$0xff]
        %v285 = vld [vmem:[%s0 + $0x100] sm:$0xff]
        %v286 = vld [vmem:[%s0 + $0x108] sm:$0xff]
        %v287 = vld [vmem:[%s0 + $0x110] sm:$0xff]
        %v288 = vld [vmem:[%s0 + $0x118] sm:$0xff]
        %v289 = vld [vmem:[%s0 + $0x120] sm:$0xff]
        %v290 = vld [vmem:[%s0 + $0x128] sm:$0xff]
        %v291 = vld [vmem:[%s0 + $0x130] sm:$0xff]
        %v292 = vld [vmem:[%s0 + $0x138] sm:$0xff]
        %v293 = vld [vmem:[%s0 + $0x140] sm:$0xff]
        %v294 = vld [vmem:[%s0 + $0x148] sm:$0xff]
        %v295 = vld [vmem:[%s0 + $0x150] sm:$0xff]
        %v296 = vld [vmem:[%s0 + $0x158] sm:$0xff]
        %v297 = vld [vmem:[%s0 + $0x160] sm:$0xff]
        %v298 = vld [vmem:[%s0 + $0x168] sm:$0xff]
        %v299 = vld [vmem:[%s0 + $0x170] sm:$0xff]
        %v300 = vld [vmem:[%s0 + $0x178] sm:$0xff]
        %v301 = vld [vmem:[%s0 + $0x180] sm:$0xff]
        %v302 = vld [vmem:[%s0 + $0x188] sm:$0xff]
        %v303 = vld [vmem:[%s0 + $0x190] sm:$0xff]
        %v304 = vld [vmem:[%s0 + $0x198] sm:$0xff]
        %v305 = vld [vmem:[%s0 + $0x1a0] sm:$0xff]
        %v306 = vld [vmem:[%s0 + $0x1a8] sm:$0xff]
        %v307 = vld [vmem:[%s0 + $0x1b0] sm:$0xff]
        %v308 = vld [vmem:[%s0 + $0x1b8] sm:$0xff]
        %v309 = vld [vmem:[%s0 + $0x1c0] sm:$0xff]
        %v310 = vld [vmem:[%s0 + $0x1c8] sm:$0xff]
        %v311 = vld [vmem:[%s0 + $0x1d0] sm:$0xff]
        %v312 = vld [vmem:[%s0 + $0x1d8] sm:$0xff]
        %v313 = vld [vmem:[%s0 + $0x1e0] sm:$0xff]
        %v314 = vld [vmem:[%s0 + $0x1e8] sm:$0xff]
        %v315 = vld [vmem:[%s0 + $0x1f0] sm:$0xff]
        %v316 = vld [vmem:[%s0 + $0x1f8] sm:$0xff]
        %v317 = vld [vmem:[%s250] sm:$0xff]
        %v318 = vld [vmem:[%s250 + $0x8] sm:$0xff]
        %v319 = vld [vmem:[%s250 + $0x10] sm:$0xff]
        %v320 = vld [vmem:[%s250 + $0x18] sm:$0xff]
        %v321 = vld [vmem:[%s250 + $0x20] sm:$0xff]
        %v322 = vld [vmem:[%s250 + $0x28] sm:$0xff]
        %v323 = vld [vmem:[%s250 + $0x30] sm:$0xff]
        %v324 = vld [vmem:[%s250 + $0x38] sm:$0xff]
        %v325 = vld [vmem:[%s250 + $0x40] sm:$0xff]
        %v326 = vld [vmem:[%s250 + $0x48] sm:$0xff]
        %v327 = vld [vmem:[%s250 + $0x50] sm:$0xff]
        %v328 = vld [vmem:[%s250 + $0x58] sm:$0xff]
        %v329 = vld [vmem:[%s250 + $0x60] sm:$0xff]
        %v330 = vld [vmem:[%s250 + $0x68] sm:$0xff]
        %v331 = vld [vmem:[%s250 + $0x70] sm:$0xff]
        %v332 = vld [vmem:[%s250 + $0x78] sm:$0xff]
        %v333 = vld [vmem:[%s250 + $0x80] sm:$0xff]
        %v334 = vld [vmem:[%s250 + $0x88] sm:$0xff]
        %v335 = vld [vmem:[%s250 + $0x90] sm:$0xff]
        %v336 = vld [vmem:[%s250 + $0x98] sm:$0xff]
        %v337 = vld [vmem:[%s250 + $0xa0] sm:$0xff]
        %v338 = vld [vmem:[%s250 + $0xa8] sm:$0xff]
        %v339 = vld [vmem:[%s250 + $0xb0] sm:$0xff]
        %v340 = vld [vmem:[%s250 + $0xb8] sm:$0xff]
        %v341 = vld [vmem:[%s250 + $0xc0] sm:$0xff]
        %v342 = vld [vmem:[%s250 + $0xc8] sm:$0xff]
        %v343 = vld [vmem:[%s250 + $0xd0] sm:$0xff]
        %v344 = vld [vmem:[%s250 + $0xd8] sm:$0xff]
        %v345 = vld [vmem:[%s250 + $0xe0] sm:$0xff]
        %v346 = vld [vmem:[%s250 + $0xe8] sm:$0xff]
        %v347 = vld [vmem:[%s250 + $0xf0] sm:$0xff]
        %v348 = vld [vmem:[%s250 + $0xf8] sm:$0xff]
        %v349 = vld [vmem:[%s2] sm:$0xff]
        %vm350 = vcmask 64512
        %v352 = vsel %vm350, %v317, 0
        %v355 = vsel %vm350, %v318, 0
        %v358 = vsel %vm350, %v319, 0
        %v361 = vsel %vm350, %v320, 0
        %v364 = vsel %vm350, %v321, 0
        %v367 = vsel %vm350, %v322, 0
        %v370 = vsel %vm350, %v323, 0
        %v373 = vsel %vm350, %v324, 0
        %v376 = vsel %vm350, %v325, 0
        %v379 = vsel %vm350, %v326, 0
        %v382 = vsel %vm350, %v327, 0
        %v385 = vsel %vm350, %v328, 0
        %v388 = vsel %vm350, %v329, 0
        %v391 = vsel %vm350, %v330, 0
        %v394 = vsel %vm350, %v331, 0
        %v397 = vsel %vm350, %v332, 0
        %v400 = vsel %vm350, %v333, 0
        %v403 = vsel %vm350, %v334, 0
        %v406 = vsel %vm350, %v335, 0
        %v409 = vsel %vm350, %v336, 0
        %v412 = vsel %vm350, %v337, 0
        %v415 = vsel %vm350, %v338, 0
        %v418 = vsel %vm350, %v339, 0
        %v421 = vsel %vm350, %v340, 0
        %v424 = vsel %vm350, %v341, 0
        %v427 = vsel %vm350, %v342, 0
        %v430 = vsel %vm350, %v343, 0
        %v433 = vsel %vm350, %v344, 0
        %v436 = vsel %vm350, %v345, 0
        %v439 = vsel %vm350, %v346, 0
        %v442 = vsel %vm350, %v347, 0
        %v445 = vsel %vm350, %v348, 0
        %447 = vmatprep.subr.mxu0 0.0
        %448 = vmatpush1.msra.mxu0 0.0
        %449 = vmatprep.subr.mxu0 0.0
        %450 = vmatpush1.msra.mxu0 0.0
        %451 = vmatprep.subr.mxu0 0.0
        %452 = vmatpush1.msra.mxu0 0.0
        %453 = vmatprep.subr.mxu0 0.0
        %454 = vmatpush1.msra.mxu0 0.0
        %455 = vmatprep.subr.mxu0 0.0
        %456 = vmatpush1.msra.mxu0 0.0
        %457 = vmatprep.subr.mxu0 0.0
        %458 = vmatpush1.msra.mxu0 0.0
        %459 = vmatprep.subr.mxu0 0.0
        %460 = vmatpush1.msra.mxu0 0.0
        %461 = vmatprep.subr.mxu0 0.0
        %462 = vmatpush1.msra.mxu0 0.0
        %463 = vmatprep.subr.mxu0 0.0
        %464 = vmatpush1.msra.mxu0 0.0
        %465 = vmatprep.subr.mxu0 0.0
        %466 = vmatpush1.msra.mxu0 0.0
        %467 = vmatprep.subr.mxu0 0.0
        %468 = vmatpush1.msra.mxu0 0.0
        %469 = vmatprep.subr.mxu0 0.0
        %470 = vmatpush1.msra.mxu0 0.0
        %471 = vmatprep.subr.mxu0 0.0
        %472 = vmatpush1.msra.mxu0 0.0
        %473 = vmatprep.subr.mxu0 0.0
        %474 = vmatpush1.msra.mxu0 0.0
        %475 = vmatprep.subr.mxu0 0.0
        %476 = vmatpush1.msra.mxu0 0.0
        %477 = vmatprep.subr.mxu0 0.0
        %478 = vmatpush1.msra.mxu0 %v349
        %479 = vmatprep.subr.mxu0 0.0
        %480 = vmatpush2.msra.mxu0 0.0
        %481 = vmatprep.subr.mxu0 0.0
        %482 = vmatpush2.msra.mxu0 0.0
        %483 = vmatprep.subr.mxu0 0.0
        %484 = vmatpush2.msra.mxu0 0.0
        %485 = vmatprep.subr.mxu0 0.0
        %486 = vmatpush2.msra.mxu0 0.0
        %487 = vmatprep.subr.mxu0 0.0
        %488 = vmatpush2.msra.mxu0 0.0
        %489 = vmatprep.subr.mxu0 0.0
        %490 = vmatpush2.msra.mxu0 0.0
        %491 = vmatprep.subr.mxu0 0.0
        %492 = vmatpush2.msra.mxu0 0.0
        %493 = vmatprep.subr.mxu0 0.0
        %494 = vmatpush2.msra.mxu0 0.0
        %495 = vmatprep.subr.mxu0 0.0
        %496 = vmatpush2.msra.mxu0 0.0
        %497 = vmatprep.subr.mxu0 0.0
        %498 = vmatpush2.msra.mxu0 0.0
        %499 = vmatprep.subr.mxu0 0.0
        %500 = vmatpush2.msra.mxu0 0.0
        %501 = vmatprep.subr.mxu0 0.0
        %502 = vmatpush2.msra.mxu0 0.0
        %503 = vmatprep.subr.mxu0 0.0
        %504 = vmatpush2.msra.mxu0 0.0
        %505 = vmatprep.subr.mxu0 0.0
        %506 = vmatpush2.msra.mxu0 0.0
        %507 = vmatprep.subr.mxu0 0.0
        %508 = vmatpush2.msra.mxu0 0.0
        %509 = vmatprep.subr.mxu0 0.0
        %510 = vmatpush2.msra.mxu0 0.0
        %511 = vmatprep.mubr.f32.mxu0 0.0
        %512 = vmatmul.mubr.f32.gmra.mxu0 %v352
        %v513 = vpop.f32.mrf.mxu0
        %v514 = vadd.f32 0.0, %v513
        %v515 = vpop.f32.mrf.mxu0
        %516 = vmatprep.mubr.f32.mxu0 0.0
        %517 = vmatmul.mubr.f32.gmra.mxu0 %v355
        %v518 = vpop.f32.mrf.mxu0
        %v519 = vadd.f32 0.0, %v518
        %v520 = vpop.f32.mrf.mxu0
        %521 = vmatprep.mubr.f32.mxu0 0.0
        %522 = vmatmul.mubr.f32.gmra.mxu0 %v358
        %v523 = vpop.f32.mrf.mxu0
        %v524 = vadd.f32 0.0, %v523
        %v525 = vpop.f32.mrf.mxu0
        %526 = vmatprep.mubr.f32.mxu0 0.0
        %527 = vmatmul.mubr.f32.gmra.mxu0 %v361
        %v528 = vpop.f32.mrf.mxu0
        %v529 = vadd.f32 0.0, %v528
        %v530 = vpop.f32.mrf.mxu0
        %531 = vmatprep.mubr.f32.mxu0 0.0
        %532 = vmatmul.mubr.f32.gmra.mxu0 %v364
        %v533 = vpop.f32.mrf.mxu0
        %v534 = vadd.f32 0.0, %v533
        %v535 = vpop.f32.mrf.mxu0
        %536 = vmatprep.mubr.f32.mxu0 0.0
        %537 = vmatmul.mubr.f32.gmra.mxu0 %v367
        %v538 = vpop.f32.mrf.mxu0
        %v539 = vadd.f32 0.0, %v538
        %v540 = vpop.f32.mrf.mxu0
        %541 = vmatprep.mubr.f32.mxu0 0.0
        %542 = vmatmul.mubr.f32.gmra.mxu0 %v370
        %v543 = vpop.f32.mrf.mxu0
        %v544 = vadd.f32 0.0, %v543
        %v545 = vpop.f32.mrf.mxu0
        %546 = vmatprep.mubr.f32.mxu0 0.0
        %547 = vmatmul.mubr.f32.gmra.mxu0 %v373
        %v548 = vpop.f32.mrf.mxu0
        %v549 = vadd.f32 0.0, %v548
        %v550 = vpop.f32.mrf.mxu0
        %551 = vmatprep.mubr.f32.mxu0 0.0
        %552 = vmatmul.mubr.f32.gmra.mxu0 %v376
        %v553 = vpop.f32.mrf.mxu0
        %v554 = vadd.f32 0.0, %v553
        %v555 = vpop.f32.mrf.mxu0
        %556 = vmatprep.mubr.f32.mxu0 0.0
        %557 = vmatmul.mubr.f32.gmra.mxu0 %v379
        %v558 = vpop.f32.mrf.mxu0
        %v559 = vadd.f32 0.0, %v558
        %v560 = vpop.f32.mrf.mxu0
        %561 = vmatprep.mubr.f32.mxu0 0.0
        %562 = vmatmul.mubr.f32.gmra.mxu0 %v382
        %v563 = vpop.f32.mrf.mxu0
        %v564 = vadd.f32 0.0, %v563
        %v565 = vpop.f32.mrf.mxu0
        %566 = vmatprep.mubr.f32.mxu0 0.0
        %567 = vmatmul.mubr.f32.gmra.mxu0 %v385
        %v568 = vpop.f32.mrf.mxu0
        %v569 = vadd.f32 0.0, %v568
        %v570 = vpop.f32.mrf.mxu0
        %571 = vmatprep.mubr.f32.mxu0 0.0
        %572 = vmatmul.mubr.f32.gmra.mxu0 %v388
        %v573 = vpop.f32.mrf.mxu0
        %v574 = vadd.f32 0.0, %v573
        %v575 = vpop.f32.mrf.mxu0
        %576 = vmatprep.mubr.f32.mxu0 0.0
        %577 = vmatmul.mubr.f32.gmra.mxu0 %v391
        %v578 = vpop.f32.mrf.mxu0
        %v579 = vadd.f32 0.0, %v578
        %v580 = vpop.f32.mrf.mxu0
        %581 = vmatprep.mubr.f32.mxu0 0.0
        %582 = vmatmul.mubr.f32.gmra.mxu0 %v394
        %v583 = vpop.f32.mrf.mxu0
        %v584 = vadd.f32 0.0, %v583
        %v585 = vpop.f32.mrf.mxu0
        %586 = vmatprep.mubr.f32.mxu0 0.0
        %587 = vmatmul.mubr.f32.gmra.mxu0 %v397
        %v588 = vpop.f32.mrf.mxu0
        %v589 = vadd.f32 0.0, %v588
        %v590 = vpop.f32.mrf.mxu0
        %591 = vmatprep.mubr.f32.mxu0 0.0
        %592 = vmatmul.mubr.f32.gmra.mxu0 %v400
        %v593 = vpop.f32.mrf.mxu0
        %v594 = vadd.f32 0.0, %v593
        %v595 = vpop.f32.mrf.mxu0
        %596 = vmatprep.mubr.f32.mxu0 0.0
        %597 = vmatmul.mubr.f32.gmra.mxu0 %v403
        %v598 = vpop.f32.mrf.mxu0
        %v599 = vadd.f32 0.0, %v598
        %v600 = vpop.f32.mrf.mxu0
        %601 = vmatprep.mubr.f32.mxu0 0.0
        %602 = vmatmul.mubr.f32.gmra.mxu0 %v406
        %v603 = vpop.f32.mrf.mxu0
        %v604 = vadd.f32 0.0, %v603
        %v605 = vpop.f32.mrf.mxu0
        %606 = vmatprep.mubr.f32.mxu0 0.0
        %607 = vmatmul.mubr.f32.gmra.mxu0 %v409
        %v608 = vpop.f32.mrf.mxu0
        %v609 = vadd.f32 0.0, %v608
        %v610 = vpop.f32.mrf.mxu0
        %611 = vmatprep.mubr.f32.mxu0 0.0
        %612 = vmatmul.mubr.f32.gmra.mxu0 %v412
        %v613 = vpop.f32.mrf.mxu0
        %v614 = vadd.f32 0.0, %v613
        %v615 = vpop.f32.mrf.mxu0
        %616 = vmatprep.mubr.f32.mxu0 0.0
        %617 = vmatmul.mubr.f32.gmra.mxu0 %v415
        %v618 = vpop.f32.mrf.mxu0
        %v619 = vadd.f32 0.0, %v618
        %v620 = vpop.f32.mrf.mxu0
        %621 = vmatprep.mubr.f32.mxu0 0.0
        %622 = vmatmul.mubr.f32.gmra.mxu0 %v418
        %v623 = vpop.f32.mrf.mxu0
        %v624 = vadd.f32 0.0, %v623
        %v625 = vpop.f32.mrf.mxu0
        %626 = vmatprep.mubr.f32.mxu0 0.0
        %627 = vmatmul.mubr.f32.gmra.mxu0 %v421
        %v628 = vpop.f32.mrf.mxu0
        %v629 = vadd.f32 0.0, %v628
        %v630 = vpop.f32.mrf.mxu0
        %631 = vmatprep.mubr.f32.mxu0 0.0
        %632 = vmatmul.mubr.f32.gmra.mxu0 %v424
        %v633 = vpop.f32.mrf.mxu0
        %v634 = vadd.f32 0.0, %v633
        %v635 = vpop.f32.mrf.mxu0
        %636 = vmatprep.mubr.f32.mxu0 0.0
        %637 = vmatmul.mubr.f32.gmra.mxu0 %v427
        %v638 = vpop.f32.mrf.mxu0
        %v639 = vadd.f32 0.0, %v638
        %v640 = vpop.f32.mrf.mxu0
        %641 = vmatprep.mubr.f32.mxu0 0.0
        %642 = vmatmul.mubr.f32.gmra.mxu0 %v430
        %v643 = vpop.f32.mrf.mxu0
        %v644 = vadd.f32 0.0, %v643
        %v645 = vpop.f32.mrf.mxu0
        %646 = vmatprep.mubr.f32.mxu0 0.0
        %647 = vmatmul.mubr.f32.gmra.mxu0 %v433
        %v648 = vpop.f32.mrf.mxu0
        %v649 = vadd.f32 0.0, %v648
        %v650 = vpop.f32.mrf.mxu0
        %651 = vmatprep.mubr.f32.mxu0 0.0
        %652 = vmatmul.mubr.f32.gmra.mxu0 %v436
        %v653 = vpop.f32.mrf.mxu0
        %v654 = vadd.f32 0.0, %v653
        %v655 = vpop.f32.mrf.mxu0
        %656 = vmatprep.mubr.f32.mxu0 0.0
        %657 = vmatmul.mubr.f32.gmra.mxu0 %v439
        %v658 = vpop.f32.mrf.mxu0
        %v659 = vadd.f32 0.0, %v658
        %v660 = vpop.f32.mrf.mxu0
        %661 = vmatprep.mubr.f32.mxu0 0.0
        %662 = vmatmul.mubr.f32.gmra.mxu0 %v442
        %v663 = vpop.f32.mrf.mxu0
        %v664 = vadd.f32 0.0, %v663
        %v665 = vpop.f32.mrf.mxu0
        %666 = vmatprep.mubr.f32.mxu0 0.0
        %667 = vmatmul.mubr.f32.gmra.mxu0 %v445
        %v668 = vpop.f32.mrf.mxu0
        %v669 = vadd.f32 0.0, %v668
        %v670 = vpop.f32.mrf.mxu0
        %671 = vdwg.mxu0
        %v672 = vld [vmem:[%s3] sm:$0x1]
        %v674 = vlaneseq
        %v675 = vshrl.u32 %v674, 7
        %v676 = vsub.s32 0, %v675
        %v677 = vrot.slane %v672, %v676
        %679 = vmatprep.subr.mxu0 0.0
        %680 = vmatpush1.msra.mxu0 %v589
        %681 = vmatprep.subr.mxu0 0.0
        %682 = vmatpush1.msra.mxu0 %v584
        %683 = vmatprep.subr.mxu0 0.0
        %684 = vmatpush1.msra.mxu0 %v579
        %685 = vmatprep.subr.mxu0 0.0
        %686 = vmatpush1.msra.mxu0 %v574
        %687 = vmatprep.subr.mxu0 0.0
        %688 = vmatpush1.msra.mxu0 %v569
        %689 = vmatprep.subr.mxu0 0.0
        %690 = vmatpush1.msra.mxu0 %v564
        %691 = vmatprep.subr.mxu0 0.0
        %692 = vmatpush1.msra.mxu0 %v559
        %693 = vmatprep.subr.mxu0 0.0
        %694 = vmatpush1.msra.mxu0 %v554
        %695 = vmatprep.subr.mxu0 0.0
        %696 = vmatpush1.msra.mxu0 %v549
        %697 = vmatprep.subr.mxu0 0.0
        %698 = vmatpush1.msra.mxu0 %v544
        %699 = vmatprep.subr.mxu0 0.0
        %700 = vmatpush1.msra.mxu0 %v539
        %701 = vmatprep.subr.mxu0 0.0
        %702 = vmatpush1.msra.mxu0 %v534
        %703 = vmatprep.subr.mxu0 0.0
        %704 = vmatpush1.msra.mxu0 %v529
        %705 = vmatprep.subr.mxu0 0.0
        %706 = vmatpush1.msra.mxu0 %v524
        %707 = vmatprep.subr.mxu0 0.0
        %708 = vmatpush1.msra.mxu0 %v519
        %709 = vmatprep.subr.mxu0 0.0
        %710 = vmatpush1.msra.mxu0 %v514
        %711 = vmatprep.subr.mxu0 0.0
        %712 = vmatpush2.msra.mxu0 %v669
        %713 = vmatprep.subr.mxu0 0.0
        %714 = vmatpush2.msra.mxu0 %v664
        %715 = vmatprep.subr.mxu0 0.0
        %716 = vmatpush2.msra.mxu0 %v659
        %717 = vmatprep.subr.mxu0 0.0
        %718 = vmatpush2.msra.mxu0 %v654
        %719 = vmatprep.subr.mxu0 0.0
        %720 = vmatpush2.msra.mxu0 %v649
        %721 = vmatprep.subr.mxu0 0.0
        %722 = vmatpush2.msra.mxu0 %v644
        %723 = vmatprep.subr.mxu0 0.0
        %724 = vmatpush2.msra.mxu0 %v639
        %725 = vmatprep.subr.mxu0 0.0
        %726 = vmatpush2.msra.mxu0 %v634
        %727 = vmatprep.subr.mxu0 0.0
        %728 = vmatpush2.msra.mxu0 %v629
        %729 = vmatprep.subr.mxu0 0.0
        %730 = vmatpush2.msra.mxu0 %v624
        %731 = vmatprep.subr.mxu0 0.0
        %732 = vmatpush2.msra.mxu0 %v619
        %733 = vmatprep.subr.mxu0 0.0
        %734 = vmatpush2.msra.mxu0 %v614
        %735 = vmatprep.subr.mxu0 0.0
        %736 = vmatpush2.msra.mxu0 %v609
        %737 = vmatprep.subr.mxu0 0.0
        %738 = vmatpush2.msra.mxu0 %v604
        %739 = vmatprep.subr.mxu0 0.0
        %740 = vmatpush2.msra.mxu0 %v599
        %741 = vmatprep.subr.mxu0 0.0
        %742 = vmatpush2.msra.mxu0 %v594
        %743 = vmatprep.mubr.f32.mxu0 %v254
        %744 = vmatmul.mubr.f32.gmra.mxu0 %v253
        %v745 = vpop.f32.mrf.mxu0
        %v746 = vadd.f32 %v677, %v745
        %v747 = vpop.f32.mrf.mxu0
        %748 = vmatprep.mubr.f32.mxu0 %v256
        %749 = vmatmul.mubr.f32.gmra.mxu0 %v255
        %v750 = vpop.f32.mrf.mxu0
        %v751 = vadd.f32 %v677, %v750
        %v752 = vpop.f32.mrf.mxu0
        %753 = vmatprep.mubr.f32.mxu0 %v258
        %754 = vmatmul.mubr.f32.gmra.mxu0 %v257
        %v755 = vpop.f32.mrf.mxu0
        %v756 = vadd.f32 %v677, %v755
        %v757 = vpop.f32.mrf.mxu0
        %758 = vmatprep.mubr.f32.mxu0 %v260
        %759 = vmatmul.mubr.f32.gmra.mxu0 %v259
        %v760 = vpop.f32.mrf.mxu0
        %v761 = vadd.f32 %v677, %v760
        %v762 = vpop.f32.mrf.mxu0
        %763 = vmatprep.mubr.f32.mxu0 %v262
        %764 = vmatmul.mubr.f32.gmra.mxu0 %v261
        %v765 = vpop.f32.mrf.mxu0
        %v766 = vadd.f32 %v677, %v765
        %v767 = vpop.f32.mrf.mxu0
        %768 = vmatprep.mubr.f32.mxu0 %v264
        %769 = vmatmul.mubr.f32.gmra.mxu0 %v263
        %v770 = vpop.f32.mrf.mxu0
        %v771 = vadd.f32 %v677, %v770
        %v772 = vpop.f32.mrf.mxu0
        %773 = vmatprep.mubr.f32.mxu0 %v266
        %774 = vmatmul.mubr.f32.gmra.mxu0 %v265
        %v775 = vpop.f32.mrf.mxu0
        %v776 = vadd.f32 %v677, %v775
        %v777 = vpop.f32.mrf.mxu0
        %778 = vmatprep.mubr.f32.mxu0 %v268
        %779 = vmatmul.mubr.f32.gmra.mxu0 %v267
        %v780 = vpop.f32.mrf.mxu0
        %v781 = vadd.f32 %v677, %v780
        %v782 = vpop.f32.mrf.mxu0
        %783 = vmatprep.mubr.f32.mxu0 %v270
        %784 = vmatmul.mubr.f32.gmra.mxu0 %v269
        %v785 = vpop.f32.mrf.mxu0
        %v786 = vadd.f32 %v677, %v785
        %v787 = vpop.f32.mrf.mxu0
        %788 = vmatprep.mubr.f32.mxu0 %v272
        %789 = vmatmul.mubr.f32.gmra.mxu0 %v271
        %v790 = vpop.f32.mrf.mxu0
        %v791 = vadd.f32 %v677, %v790
        %v792 = vpop.f32.mrf.mxu0
        %793 = vmatprep.mubr.f32.mxu0 %v274
        %794 = vmatmul.mubr.f32.gmra.mxu0 %v273
        %v795 = vpop.f32.mrf.mxu0
        %v796 = vadd.f32 %v677, %v795
        %v797 = vpop.f32.mrf.mxu0
        %798 = vmatprep.mubr.f32.mxu0 %v276
        %799 = vmatmul.mubr.f32.gmra.mxu0 %v275
        %v800 = vpop.f32.mrf.mxu0
        %v801 = vadd.f32 %v677, %v800
        %v802 = vpop.f32.mrf.mxu0
        %803 = vmatprep.mubr.f32.mxu0 %v278
        %804 = vmatmul.mubr.f32.gmra.mxu0 %v277
        %v805 = vpop.f32.mrf.mxu0
        %v806 = vadd.f32 %v677, %v805
        %v807 = vpop.f32.mrf.mxu0
        %808 = vmatprep.mubr.f32.mxu0 %v280
        %809 = vmatmul.mubr.f32.gmra.mxu0 %v279
        %v810 = vpop.f32.mrf.mxu0
        %v811 = vadd.f32 %v677, %v810
        %v812 = vpop.f32.mrf.mxu0
        %813 = vmatprep.mubr.f32.mxu0 %v282
        %814 = vmatmul.mubr.f32.gmra.mxu0 %v281
        %v815 = vpop.f32.mrf.mxu0
        %v816 = vadd.f32 %v677, %v815
        %v817 = vpop.f32.mrf.mxu0
        %818 = vmatprep.mubr.f32.mxu0 %v284
        %819 = vmatmul.mubr.f32.gmra.mxu0 %v283
        %v820 = vpop.f32.mrf.mxu0
        %v821 = vadd.f32 %v677, %v820
        %v822 = vpop.f32.mrf.mxu0
        %823 = vmatprep.mubr.f32.mxu0 %v286
        %824 = vmatmul.mubr.f32.gmra.mxu0 %v285
        %v825 = vpop.f32.mrf.mxu0
        %v826 = vadd.f32 %v677, %v825
        %v827 = vpop.f32.mrf.mxu0
        %828 = vmatprep.mubr.f32.mxu0 %v288
        %829 = vmatmul.mubr.f32.gmra.mxu0 %v287
        %v830 = vpop.f32.mrf.mxu0
        %v831 = vadd.f32 %v677, %v830
        %v832 = vpop.f32.mrf.mxu0
        %833 = vmatprep.mubr.f32.mxu0 %v290
        %834 = vmatmul.mubr.f32.gmra.mxu0 %v289
        %v835 = vpop.f32.mrf.mxu0
        %v836 = vadd.f32 %v677, %v835
        %v837 = vpop.f32.mrf.mxu0
        %838 = vmatprep.mubr.f32.mxu0 %v292
        %839 = vmatmul.mubr.f32.gmra.mxu0 %v291
        %v840 = vpop.f32.mrf.mxu0
        %v841 = vadd.f32 %v677, %v840
        %v842 = vpop.f32.mrf.mxu0
        %843 = vmatprep.mubr.f32.mxu0 %v294
        %844 = vmatmul.mubr.f32.gmra.mxu0 %v293
        %v845 = vpop.f32.mrf.mxu0
        %v846 = vadd.f32 %v677, %v845
        %v847 = vpop.f32.mrf.mxu0
        %848 = vmatprep.mubr.f32.mxu0 %v296
        %849 = vmatmul.mubr.f32.gmra.mxu0 %v295
        %v850 = vpop.f32.mrf.mxu0
        %v851 = vadd.f32 %v677, %v850
        %v852 = vpop.f32.mrf.mxu0
        %853 = vmatprep.mubr.f32.mxu0 %v298
        %854 = vmatmul.mubr.f32.gmra.mxu0 %v297
        %v855 = vpop.f32.mrf.mxu0
        %v856 = vadd.f32 %v677, %v855
        %v857 = vpop.f32.mrf.mxu0
        %858 = vmatprep.mubr.f32.mxu0 %v300
        %859 = vmatmul.mubr.f32.gmra.mxu0 %v299
        %v860 = vpop.f32.mrf.mxu0
        %v861 = vadd.f32 %v677, %v860
        %v862 = vpop.f32.mrf.mxu0
        %863 = vmatprep.mubr.f32.mxu0 %v302
        %864 = vmatmul.mubr.f32.gmra.mxu0 %v301
        %v865 = vpop.f32.mrf.mxu0
        %v866 = vadd.f32 %v677, %v865
        %v867 = vpop.f32.mrf.mxu0
        %868 = vmatprep.mubr.f32.mxu0 %v304
        %869 = vmatmul.mubr.f32.gmra.mxu0 %v303
        %v870 = vpop.f32.mrf.mxu0
        %v871 = vadd.f32 %v677, %v870
        %v872 = vpop.f32.mrf.mxu0
        %873 = vmatprep.mubr.f32.mxu0 %v306
        %874 = vmatmul.mubr.f32.gmra.mxu0 %v305
        %v875 = vpop.f32.mrf.mxu0
        %v876 = vadd.f32 %v677, %v875
        %v877 = vpop.f32.mrf.mxu0
        %878 = vmatprep.mubr.f32.mxu0 %v308
        %879 = vmatmul.mubr.f32.gmra.mxu0 %v307
        %v880 = vpop.f32.mrf.mxu0
        %v881 = vadd.f32 %v677, %v880
        %v882 = vpop.f32.mrf.mxu0
        %883 = vmatprep.mubr.f32.mxu0 %v310
        %884 = vmatmul.mubr.f32.gmra.mxu0 %v309
        %v885 = vpop.f32.mrf.mxu0
        %v886 = vadd.f32 %v677, %v885
        %v887 = vpop.f32.mrf.mxu0
        %888 = vmatprep.mubr.f32.mxu0 %v312
        %889 = vmatmul.mubr.f32.gmra.mxu0 %v311
        %v890 = vpop.f32.mrf.mxu0
        %v891 = vadd.f32 %v677, %v890
        %v892 = vpop.f32.mrf.mxu0
        %893 = vmatprep.mubr.f32.mxu0 %v314
        %894 = vmatmul.mubr.f32.gmra.mxu0 %v313
        %v895 = vpop.f32.mrf.mxu0
        %v896 = vadd.f32 %v677, %v895
        %v897 = vpop.f32.mrf.mxu0
        %898 = vmatprep.mubr.f32.mxu0 %v316
        %899 = vmatmul.mubr.f32.gmra.mxu0 %v315
        %v900 = vpop.f32.mrf.mxu0
        %v901 = vadd.f32 %v677, %v900
        %v902 = vpop.f32.mrf.mxu0
        %903 = vdwg.mxu0
        %v904 = vmax.f32 %v746, 0.0
        %v905 = vmax.f32 %v751, 0.0
        %v906 = vmax.f32 %v756, 0.0
        %v907 = vmax.f32 %v761, 0.0
        %v908 = vmax.f32 %v766, 0.0
        %v909 = vmax.f32 %v771, 0.0
        %v910 = vmax.f32 %v776, 0.0
        %v911 = vmax.f32 %v781, 0.0
        %v912 = vmax.f32 %v786, 0.0
        %v913 = vmax.f32 %v791, 0.0
        %v914 = vmax.f32 %v796, 0.0
        %v915 = vmax.f32 %v801, 0.0
        %v916 = vmax.f32 %v806, 0.0
        %v917 = vmax.f32 %v811, 0.0
        %v918 = vmax.f32 %v816, 0.0
        %v919 = vmax.f32 %v821, 0.0
        %v920 = vmax.f32 %v826, 0.0
        %v921 = vmax.f32 %v831, 0.0
        %v922 = vmax.f32 %v836, 0.0
        %v923 = vmax.f32 %v841, 0.0
        %v924 = vmax.f32 %v846, 0.0
        %v925 = vmax.f32 %v851, 0.0
        %v926 = vmax.f32 %v856, 0.0
        %v927 = vmax.f32 %v861, 0.0
        %v928 = vmax.f32 %v866, 0.0
        %v929 = vmax.f32 %v871, 0.0
        %v930 = vmax.f32 %v876, 0.0
        %v931 = vmax.f32 %v881, 0.0
        %v932 = vmax.f32 %v886, 0.0
        %v933 = vmax.f32 %v891, 0.0
        %v934 = vmax.f32 %v896, 0.0
        %v935 = vmax.f32 %v901, 0.0
        %v936 = vld [vmem:[%s4] sm:$0xff]
        %v937 = vld [vmem:[%s4 + $0x8] sm:$0xff]
        %v938 = vld [vmem:[%s4 + $0x10] sm:$0xff]
        %v939 = vld [vmem:[%s4 + $0x18] sm:$0xff]
        %v940 = vld [vmem:[%s4 + $0x20] sm:$0xff]
        %v941 = vld [vmem:[%s4 + $0x28] sm:$0xff]
        %v942 = vld [vmem:[%s4 + $0x30] sm:$0xff]
        %v943 = vld [vmem:[%s4 + $0x38] sm:$0xff]
        %v944 = vld [vmem:[%s4 + $0x40] sm:$0xff]
        %v945 = vld [vmem:[%s4 + $0x48] sm:$0xff]
        %v946 = vld [vmem:[%s4 + $0x50] sm:$0xff]
        %v947 = vld [vmem:[%s4 + $0x58] sm:$0xff]
        %v948 = vld [vmem:[%s4 + $0x60] sm:$0xff]
        %v949 = vld [vmem:[%s4 + $0x68] sm:$0xff]
        %v950 = vld [vmem:[%s4 + $0x70] sm:$0xff]
        %v951 = vld [vmem:[%s4 + $0x78] sm:$0xff]
        %952 = vmatprep.subr.mxu0 0.0
        %953 = vmatpush1.msra.mxu0 %v951
        %954 = vmatprep.subr.mxu0 0.0
        %955 = vmatpush1.msra.mxu0 %v950
        %956 = vmatprep.subr.mxu0 0.0
        %957 = vmatpush1.msra.mxu0 %v949
        %958 = vmatprep.subr.mxu0 0.0
        %959 = vmatpush1.msra.mxu0 %v948
        %960 = vmatprep.subr.mxu0 0.0
        %961 = vmatpush1.msra.mxu0 %v947
        %962 = vmatprep.subr.mxu0 0.0
        %963 = vmatpush1.msra.mxu0 %v946
        %964 = vmatprep.subr.mxu0 0.0
        %965 = vmatpush1.msra.mxu0 %v945
        %966 = vmatprep.subr.mxu0 0.0
        %967 = vmatpush1.msra.mxu0 %v944
        %968 = vmatprep.subr.mxu0 0.0
        %969 = vmatpush1.msra.mxu0 %v943
        %970 = vmatprep.subr.mxu0 0.0
        %971 = vmatpush1.msra.mxu0 %v942
        %972 = vmatprep.subr.mxu0 0.0
        %973 = vmatpush1.msra.mxu0 %v941
        %974 = vmatprep.subr.mxu0 0.0
        %975 = vmatpush1.msra.mxu0 %v940
        %976 = vmatprep.subr.mxu0 0.0
        %977 = vmatpush1.msra.mxu0 %v939
        %978 = vmatprep.subr.mxu0 0.0
        %979 = vmatpush1.msra.mxu0 %v938
        %980 = vmatprep.subr.mxu0 0.0
        %981 = vmatpush1.msra.mxu0 %v937
        %982 = vmatprep.subr.mxu0 0.0
        %983 = vmatpush1.msra.mxu0 %v936
        %984 = vmatprep.subr.mxu0 0.0
        %985 = vmatpush2.msra.mxu0 0.0
        %986 = vmatprep.subr.mxu0 0.0
        %987 = vmatpush2.msra.mxu0 0.0
        %988 = vmatprep.subr.mxu0 0.0
        %989 = vmatpush2.msra.mxu0 0.0
        %990 = vmatprep.subr.mxu0 0.0
        %991 = vmatpush2.msra.mxu0 0.0
        %992 = vmatprep.subr.mxu0 0.0
        %993 = vmatpush2.msra.mxu0 0.0
        %994 = vmatprep.subr.mxu0 0.0
        %995 = vmatpush2.msra.mxu0 0.0
        %996 = vmatprep.subr.mxu0 0.0
        %997 = vmatpush2.msra.mxu0 0.0
        %998 = vmatprep.subr.mxu0 0.0
        %999 = vmatpush2.msra.mxu0 0.0
        %1000 = vmatprep.subr.mxu0 0.0
        %1001 = vmatpush2.msra.mxu0 0.0
        %1002 = vmatprep.subr.mxu0 0.0
        %1003 = vmatpush2.msra.mxu0 0.0
        %1004 = vmatprep.subr.mxu0 0.0
        %1005 = vmatpush2.msra.mxu0 0.0
        %1006 = vmatprep.subr.mxu0 0.0
        %1007 = vmatpush2.msra.mxu0 0.0
        %1008 = vmatprep.subr.mxu0 0.0
        %1009 = vmatpush2.msra.mxu0 0.0
        %1010 = vmatprep.subr.mxu0 0.0
        %1011 = vmatpush2.msra.mxu0 0.0
        %1012 = vmatprep.subr.mxu0 0.0
        %1013 = vmatpush2.msra.mxu0 0.0
        %1014 = vmatprep.subr.mxu0 0.0
        %1015 = vmatpush2.msra.mxu0 0.0
        %1016 = vmatprep.mubr.f32.mxu0 0.0
        %1017 = vmatmul.mubr.f32.gmra.mxu0 %v904
        %v1018 = vpop.f32.mrf.mxu0
        %v1019 = vadd.f32 0.0, %v1018
        %v1020 = vpop.f32.mrf.mxu0
        %1021 = vmatprep.mubr.f32.mxu0 0.0
        %1022 = vmatmul.mubr.f32.gmra.mxu0 %v905
        %v1023 = vpop.f32.mrf.mxu0
        %v1024 = vadd.f32 0.0, %v1023
        %v1025 = vpop.f32.mrf.mxu0
        %1026 = vmatprep.mubr.f32.mxu0 0.0
        %1027 = vmatmul.mubr.f32.gmra.mxu0 %v906
        %v1028 = vpop.f32.mrf.mxu0
        %v1029 = vadd.f32 0.0, %v1028
        %v1030 = vpop.f32.mrf.mxu0
        %1031 = vmatprep.mubr.f32.mxu0 0.0
        %1032 = vmatmul.mubr.f32.gmra.mxu0 %v907
        %v1033 = vpop.f32.mrf.mxu0
        %v1034 = vadd.f32 0.0, %v1033
        %v1035 = vpop.f32.mrf.mxu0
        %1036 = vmatprep.mubr.f32.mxu0 0.0
        %1037 = vmatmul.mubr.f32.gmra.mxu0 %v908
        %v1038 = vpop.f32.mrf.mxu0
        %v1039 = vadd.f32 0.0, %v1038
        %v1040 = vpop.f32.mrf.mxu0
        %1041 = vmatprep.mubr.f32.mxu0 0.0
        %1042 = vmatmul.mubr.f32.gmra.mxu0 %v909
        %v1043 = vpop.f32.mrf.mxu0
        %v1044 = vadd.f32 0.0, %v1043
        %v1045 = vpop.f32.mrf.mxu0
        %1046 = vmatprep.mubr.f32.mxu0 0.0
        %1047 = vmatmul.mubr.f32.gmra.mxu0 %v910
        %v1048 = vpop.f32.mrf.mxu0
        %v1049 = vadd.f32 0.0, %v1048
        %v1050 = vpop.f32.mrf.mxu0
        %1051 = vmatprep.mubr.f32.mxu0 0.0
        %1052 = vmatmul.mubr.f32.gmra.mxu0 %v911
        %v1053 = vpop.f32.mrf.mxu0
        %v1054 = vadd.f32 0.0, %v1053
        %v1055 = vpop.f32.mrf.mxu0
        %1056 = vmatprep.mubr.f32.mxu0 0.0
        %1057 = vmatmul.mubr.f32.gmra.mxu0 %v912
        %v1058 = vpop.f32.mrf.mxu0
        %v1059 = vadd.f32 0.0, %v1058
        %v1060 = vpop.f32.mrf.mxu0
        %1061 = vmatprep.mubr.f32.mxu0 0.0
        %1062 = vmatmul.mubr.f32.gmra.mxu0 %v913
        %v1063 = vpop.f32.mrf.mxu0
        %v1064 = vadd.f32 0.0, %v1063
        %v1065 = vpop.f32.mrf.mxu0
        %1066 = vmatprep.mubr.f32.mxu0 0.0
        %1067 = vmatmul.mubr.f32.gmra.mxu0 %v914
        %v1068 = vpop.f32.mrf.mxu0
        %v1069 = vadd.f32 0.0, %v1068
        %v1070 = vpop.f32.mrf.mxu0
        %1071 = vmatprep.mubr.f32.mxu0 0.0
        %1072 = vmatmul.mubr.f32.gmra.mxu0 %v915
        %v1073 = vpop.f32.mrf.mxu0
        %v1074 = vadd.f32 0.0, %v1073
        %v1075 = vpop.f32.mrf.mxu0
        %1076 = vmatprep.mubr.f32.mxu0 0.0
        %1077 = vmatmul.mubr.f32.gmra.mxu0 %v916
        %v1078 = vpop.f32.mrf.mxu0
        %v1079 = vadd.f32 0.0, %v1078
        %v1080 = vpop.f32.mrf.mxu0
        %1081 = vmatprep.mubr.f32.mxu0 0.0
        %1082 = vmatmul.mubr.f32.gmra.mxu0 %v917
        %v1083 = vpop.f32.mrf.mxu0
        %v1084 = vadd.f32 0.0, %v1083
        %v1085 = vpop.f32.mrf.mxu0
        %1086 = vmatprep.mubr.f32.mxu0 0.0
        %1087 = vmatmul.mubr.f32.gmra.mxu0 %v918
        %v1088 = vpop.f32.mrf.mxu0
        %v1089 = vadd.f32 0.0, %v1088
        %v1090 = vpop.f32.mrf.mxu0
        %1091 = vmatprep.mubr.f32.mxu0 0.0
        %1092 = vmatmul.mubr.f32.gmra.mxu0 %v919
        %v1093 = vpop.f32.mrf.mxu0
        %v1094 = vadd.f32 0.0, %v1093
        %v1095 = vpop.f32.mrf.mxu0
        %1096 = vmatprep.mubr.f32.mxu0 0.0
        %1097 = vmatmul.mubr.f32.gmra.mxu0 %v920
        %v1098 = vpop.f32.mrf.mxu0
        %v1099 = vadd.f32 0.0, %v1098
        %v1100 = vpop.f32.mrf.mxu0
        %1101 = vmatprep.mubr.f32.mxu0 0.0
        %1102 = vmatmul.mubr.f32.gmra.mxu0 %v921
        %v1103 = vpop.f32.mrf.mxu0
        %v1104 = vadd.f32 0.0, %v1103
        %v1105 = vpop.f32.mrf.mxu0
        %1106 = vmatprep.mubr.f32.mxu0 0.0
        %1107 = vmatmul.mubr.f32.gmra.mxu0 %v922
        %v1108 = vpop.f32.mrf.mxu0
        %v1109 = vadd.f32 0.0, %v1108
        %v1110 = vpop.f32.mrf.mxu0
        %1111 = vmatprep.mubr.f32.mxu0 0.0
        %1112 = vmatmul.mubr.f32.gmra.mxu0 %v923
        %v1113 = vpop.f32.mrf.mxu0
        %v1114 = vadd.f32 0.0, %v1113
        %v1115 = vpop.f32.mrf.mxu0
        %1116 = vmatprep.mubr.f32.mxu0 0.0
        %1117 = vmatmul.mubr.f32.gmra.mxu0 %v924
        %v1118 = vpop.f32.mrf.mxu0
        %v1119 = vadd.f32 0.0, %v1118
        %v1120 = vpop.f32.mrf.mxu0
        %1121 = vmatprep.mubr.f32.mxu0 0.0
        %1122 = vmatmul.mubr.f32.gmra.mxu0 %v925
        %v1123 = vpop.f32.mrf.mxu0
        %v1124 = vadd.f32 0.0, %v1123
        %v1125 = vpop.f32.mrf.mxu0
        %1126 = vmatprep.mubr.f32.mxu0 0.0
        %1127 = vmatmul.mubr.f32.gmra.mxu0 %v926
        %v1128 = vpop.f32.mrf.mxu0
        %v1129 = vadd.f32 0.0, %v1128
        %v1130 = vpop.f32.mrf.mxu0
        %1131 = vmatprep.mubr.f32.mxu0 0.0
        %1132 = vmatmul.mubr.f32.gmra.mxu0 %v927
        %v1133 = vpop.f32.mrf.mxu0
        %v1134 = vadd.f32 0.0, %v1133
        %v1135 = vpop.f32.mrf.mxu0
        %1136 = vmatprep.mubr.f32.mxu0 0.0
        %1137 = vmatmul.mubr.f32.gmra.mxu0 %v928
        %v1138 = vpop.f32.mrf.mxu0
        %v1139 = vadd.f32 0.0, %v1138
        %v1140 = vpop.f32.mrf.mxu0
        %1141 = vmatprep.mubr.f32.mxu0 0.0
        %1142 = vmatmul.mubr.f32.gmra.mxu0 %v929
        %v1143 = vpop.f32.mrf.mxu0
        %v1144 = vadd.f32 0.0, %v1143
        %v1145 = vpop.f32.mrf.mxu0
        %1146 = vmatprep.mubr.f32.mxu0 0.0
        %1147 = vmatmul.mubr.f32.gmra.mxu0 %v930
        %v1148 = vpop.f32.mrf.mxu0
        %v1149 = vadd.f32 0.0, %v1148
        %v1150 = vpop.f32.mrf.mxu0
        %1151 = vmatprep.mubr.f32.mxu0 0.0
        %1152 = vmatmul.mubr.f32.gmra.mxu0 %v931
        %v1153 = vpop.f32.mrf.mxu0
        %v1154 = vadd.f32 0.0, %v1153
        %v1155 = vpop.f32.mrf.mxu0
        %1156 = vmatprep.mubr.f32.mxu0 0.0
        %1157 = vmatmul.mubr.f32.gmra.mxu0 %v932
        %v1158 = vpop.f32.mrf.mxu0
        %v1159 = vadd.f32 0.0, %v1158
        %v1160 = vpop.f32.mrf.mxu0
        %1161 = vmatprep.mubr.f32.mxu0 0.0
        %1162 = vmatmul.mubr.f32.gmra.mxu0 %v933
        %v1163 = vpop.f32.mrf.mxu0
        %v1164 = vadd.f32 0.0, %v1163
        %v1165 = vpop.f32.mrf.mxu0
        %1166 = vmatprep.mubr.f32.mxu0 0.0
        %1167 = vmatmul.mubr.f32.gmra.mxu0 %v934
        %v1168 = vpop.f32.mrf.mxu0
        %v1169 = vadd.f32 0.0, %v1168
        %v1170 = vpop.f32.mrf.mxu0
        %1171 = vmatprep.mubr.f32.mxu0 0.0
        %1172 = vmatmul.mubr.f32.gmra.mxu0 %v935
        %v1173 = vpop.f32.mrf.mxu0
        %v1174 = vadd.f32 0.0, %v1173
        %v1175 = vpop.f32.mrf.mxu0
        %1176 = vdwg.mxu0
        %v1177 = vld [vmem:[%s5] sm:$0x1]
        %v1179 = vlaneseq
        %v1180 = vshrl.u32 %v1179, 7
        %v1181 = vsub.s32 0, %v1180
        %v1182 = vrot.slane %v1177, %v1181
        %1184 = vmatprep.subr.mxu0 0.0
        %1185 = vmatpush1.msra.mxu0 %v1094
        %1186 = vmatprep.subr.mxu0 0.0
        %1187 = vmatpush1.msra.mxu0 %v1089
        %1188 = vmatprep.subr.mxu0 0.0
        %1189 = vmatpush1.msra.mxu0 %v1084
        %1190 = vmatprep.subr.mxu0 0.0
        %1191 = vmatpush1.msra.mxu0 %v1079
        %1192 = vmatprep.subr.mxu0 0.0
        %1193 = vmatpush1.msra.mxu0 %v1074
        %1194 = vmatprep.subr.mxu0 0.0
        %1195 = vmatpush1.msra.mxu0 %v1069
        %1196 = vmatprep.subr.mxu0 0.0
        %1197 = vmatpush1.msra.mxu0 %v1064
        %1198 = vmatprep.subr.mxu0 0.0
        %1199 = vmatpush1.msra.mxu0 %v1059
        %1200 = vmatprep.subr.mxu0 0.0
        %1201 = vmatpush1.msra.mxu0 %v1054
        %1202 = vmatprep.subr.mxu0 0.0
        %1203 = vmatpush1.msra.mxu0 %v1049
        %1204 = vmatprep.subr.mxu0 0.0
        %1205 = vmatpush1.msra.mxu0 %v1044
        %1206 = vmatprep.subr.mxu0 0.0
        %1207 = vmatpush1.msra.mxu0 %v1039
        %1208 = vmatprep.subr.mxu0 0.0
        %1209 = vmatpush1.msra.mxu0 %v1034
        %1210 = vmatprep.subr.mxu0 0.0
        %1211 = vmatpush1.msra.mxu0 %v1029
        %1212 = vmatprep.subr.mxu0 0.0
        %1213 = vmatpush1.msra.mxu0 %v1024
        %1214 = vmatprep.subr.mxu0 0.0
        %1215 = vmatpush1.msra.mxu0 %v1019
        %1216 = vmatprep.subr.mxu0 0.0
        %1217 = vmatpush2.msra.mxu0 %v1174
        %1218 = vmatprep.subr.mxu0 0.0
        %1219 = vmatpush2.msra.mxu0 %v1169
        %1220 = vmatprep.subr.mxu0 0.0
        %1221 = vmatpush2.msra.mxu0 %v1164
        %1222 = vmatprep.subr.mxu0 0.0
        %1223 = vmatpush2.msra.mxu0 %v1159
        %1224 = vmatprep.subr.mxu0 0.0
        %1225 = vmatpush2.msra.mxu0 %v1154
        %1226 = vmatprep.subr.mxu0 0.0
        %1227 = vmatpush2.msra.mxu0 %v1149
        %1228 = vmatprep.subr.mxu0 0.0
        %1229 = vmatpush2.msra.mxu0 %v1144
        %1230 = vmatprep.subr.mxu0 0.0
        %1231 = vmatpush2.msra.mxu0 %v1139
        %1232 = vmatprep.subr.mxu0 0.0
        %1233 = vmatpush2.msra.mxu0 %v1134
        %1234 = vmatprep.subr.mxu0 0.0
        %1235 = vmatpush2.msra.mxu0 %v1129
        %1236 = vmatprep.subr.mxu0 0.0
        %1237 = vmatpush2.msra.mxu0 %v1124
        %1238 = vmatprep.subr.mxu0 0.0
        %1239 = vmatpush2.msra.mxu0 %v1119
        %1240 = vmatprep.subr.mxu0 0.0
        %1241 = vmatpush2.msra.mxu0 %v1114
        %1242 = vmatprep.subr.mxu0 0.0
        %1243 = vmatpush2.msra.mxu0 %v1109
        %1244 = vmatprep.subr.mxu0 0.0
        %1245 = vmatpush2.msra.mxu0 %v1104
        %1246 = vmatprep.subr.mxu0 0.0
        %1247 = vmatpush2.msra.mxu0 %v1099
        %1248 = vmatprep.mubr.f32.mxu0 %v254
        %1249 = vmatmul.mubr.f32.gmra.mxu0 %v253
        %v1250 = vpop.f32.mrf.mxu0
        %v1251 = vadd.f32 %v1182, %v1250
        %v1252 = vpop.f32.mrf.mxu0
        %1253 = vmatprep.mubr.f32.mxu0 %v256
        %1254 = vmatmul.mubr.f32.gmra.mxu0 %v255
        %v1255 = vpop.f32.mrf.mxu0
        %v1256 = vadd.f32 %v1182, %v1255
        %v1257 = vpop.f32.mrf.mxu0
        %1258 = vmatprep.mubr.f32.mxu0 %v258
        %1259 = vmatmul.mubr.f32.gmra.mxu0 %v257
        %v1260 = vpop.f32.mrf.mxu0
        %v1261 = vadd.f32 %v1182, %v1260
        %v1262 = vpop.f32.mrf.mxu0
        %1263 = vmatprep.mubr.f32.mxu0 %v260
        %1264 = vmatmul.mubr.f32.gmra.mxu0 %v259
        %v1265 = vpop.f32.mrf.mxu0
        %v1266 = vadd.f32 %v1182, %v1265
        %v1267 = vpop.f32.mrf.mxu0
        %1268 = vmatprep.mubr.f32.mxu0 %v262
        %1269 = vmatmul.mubr.f32.gmra.mxu0 %v261
        %v1270 = vpop.f32.mrf.mxu0
        %v1271 = vadd.f32 %v1182, %v1270
        %v1272 = vpop.f32.mrf.mxu0
        %1273 = vmatprep.mubr.f32.mxu0 %v264
        %1274 = vmatmul.mubr.f32.gmra.mxu0 %v263
        %v1275 = vpop.f32.mrf.mxu0
        %v1276 = vadd.f32 %v1182, %v1275
        %v1277 = vpop.f32.mrf.mxu0
        %1278 = vmatprep.mubr.f32.mxu0 %v266
        %1279 = vmatmul.mubr.f32.gmra.mxu0 %v265
        %v1280 = vpop.f32.mrf.mxu0
        %v1281 = vadd.f32 %v1182, %v1280
        %v1282 = vpop.f32.mrf.mxu0
        %1283 = vmatprep.mubr.f32.mxu0 %v268
        %1284 = vmatmul.mubr.f32.gmra.mxu0 %v267
        %v1285 = vpop.f32.mrf.mxu0
        %v1286 = vadd.f32 %v1182, %v1285
        %v1287 = vpop.f32.mrf.mxu0
        %1288 = vmatprep.mubr.f32.mxu0 %v270
        %1289 = vmatmul.mubr.f32.gmra.mxu0 %v269
        %v1290 = vpop.f32.mrf.mxu0
        %v1291 = vadd.f32 %v1182, %v1290
        %v1292 = vpop.f32.mrf.mxu0
        %1293 = vmatprep.mubr.f32.mxu0 %v272
        %1294 = vmatmul.mubr.f32.gmra.mxu0 %v271
        %v1295 = vpop.f32.mrf.mxu0
        %v1296 = vadd.f32 %v1182, %v1295
        %v1297 = vpop.f32.mrf.mxu0
        %1298 = vmatprep.mubr.f32.mxu0 %v274
        %1299 = vmatmul.mubr.f32.gmra.mxu0 %v273
        %v1300 = vpop.f32.mrf.mxu0
        %v1301 = vadd.f32 %v1182, %v1300
        %v1302 = vpop.f32.mrf.mxu0
        %1303 = vmatprep.mubr.f32.mxu0 %v276
        %1304 = vmatmul.mubr.f32.gmra.mxu0 %v275
        %v1305 = vpop.f32.mrf.mxu0
        %v1306 = vadd.f32 %v1182, %v1305
        %v1307 = vpop.f32.mrf.mxu0
        %1308 = vmatprep.mubr.f32.mxu0 %v278
        %1309 = vmatmul.mubr.f32.gmra.mxu0 %v277
        %v1310 = vpop.f32.mrf.mxu0
        %v1311 = vadd.f32 %v1182, %v1310
        %v1312 = vpop.f32.mrf.mxu0
        %1313 = vmatprep.mubr.f32.mxu0 %v280
        %1314 = vmatmul.mubr.f32.gmra.mxu0 %v279
        %v1315 = vpop.f32.mrf.mxu0
        %v1316 = vadd.f32 %v1182, %v1315
        %v1317 = vpop.f32.mrf.mxu0
        %1318 = vmatprep.mubr.f32.mxu0 %v282
        %1319 = vmatmul.mubr.f32.gmra.mxu0 %v281
        %v1320 = vpop.f32.mrf.mxu0
        %v1321 = vadd.f32 %v1182, %v1320
        %v1322 = vpop.f32.mrf.mxu0
        %1323 = vmatprep.mubr.f32.mxu0 %v284
        %1324 = vmatmul.mubr.f32.gmra.mxu0 %v283
        %v1325 = vpop.f32.mrf.mxu0
        %v1326 = vadd.f32 %v1182, %v1325
        %v1327 = vpop.f32.mrf.mxu0
        %1328 = vmatprep.mubr.f32.mxu0 %v286
        %1329 = vmatmul.mubr.f32.gmra.mxu0 %v285
        %v1330 = vpop.f32.mrf.mxu0
        %v1331 = vadd.f32 %v1182, %v1330
        %v1332 = vpop.f32.mrf.mxu0
        %1333 = vmatprep.mubr.f32.mxu0 %v288
        %1334 = vmatmul.mubr.f32.gmra.mxu0 %v287
        %v1335 = vpop.f32.mrf.mxu0
        %v1336 = vadd.f32 %v1182, %v1335
        %v1337 = vpop.f32.mrf.mxu0
        %1338 = vmatprep.mubr.f32.mxu0 %v290
        %1339 = vmatmul.mubr.f32.gmra.mxu0 %v289
        %v1340 = vpop.f32.mrf.mxu0
        %v1341 = vadd.f32 %v1182, %v1340
        %v1342 = vpop.f32.mrf.mxu0
        %1343 = vmatprep.mubr.f32.mxu0 %v292
        %1344 = vmatmul.mubr.f32.gmra.mxu0 %v291
        %v1345 = vpop.f32.mrf.mxu0
        %v1346 = vadd.f32 %v1182, %v1345
        %v1347 = vpop.f32.mrf.mxu0
        %1348 = vmatprep.mubr.f32.mxu0 %v294
        %1349 = vmatmul.mubr.f32.gmra.mxu0 %v293
        %v1350 = vpop.f32.mrf.mxu0
        %v1351 = vadd.f32 %v1182, %v1350
        %v1352 = vpop.f32.mrf.mxu0
        %1353 = vmatprep.mubr.f32.mxu0 %v296
        %1354 = vmatmul.mubr.f32.gmra.mxu0 %v295
        %v1355 = vpop.f32.mrf.mxu0
        %v1356 = vadd.f32 %v1182, %v1355
        %v1357 = vpop.f32.mrf.mxu0
        %1358 = vmatprep.mubr.f32.mxu0 %v298
        %1359 = vmatmul.mubr.f32.gmra.mxu0 %v297
        %v1360 = vpop.f32.mrf.mxu0
        %v1361 = vadd.f32 %v1182, %v1360
        %v1362 = vpop.f32.mrf.mxu0
        %1363 = vmatprep.mubr.f32.mxu0 %v300
        %1364 = vmatmul.mubr.f32.gmra.mxu0 %v299
        %v1365 = vpop.f32.mrf.mxu0
        %v1366 = vadd.f32 %v1182, %v1365
        %v1367 = vpop.f32.mrf.mxu0
        %1368 = vmatprep.mubr.f32.mxu0 %v302
        %1369 = vmatmul.mubr.f32.gmra.mxu0 %v301
        %v1370 = vpop.f32.mrf.mxu0
        %v1371 = vadd.f32 %v1182, %v1370
        %v1372 = vpop.f32.mrf.mxu0
        %1373 = vmatprep.mubr.f32.mxu0 %v304
        %1374 = vmatmul.mubr.f32.gmra.mxu0 %v303
        %v1375 = vpop.f32.mrf.mxu0
        %v1376 = vadd.f32 %v1182, %v1375
        %v1377 = vpop.f32.mrf.mxu0
        %1378 = vmatprep.mubr.f32.mxu0 %v306
        %1379 = vmatmul.mubr.f32.gmra.mxu0 %v305
        %v1380 = vpop.f32.mrf.mxu0
        %v1381 = vadd.f32 %v1182, %v1380
        %v1382 = vpop.f32.mrf.mxu0
        %1383 = vmatprep.mubr.f32.mxu0 %v308
        %1384 = vmatmul.mubr.f32.gmra.mxu0 %v307
        %v1385 = vpop.f32.mrf.mxu0
        %v1386 = vadd.f32 %v1182, %v1385
        %v1387 = vpop.f32.mrf.mxu0
        %1388 = vmatprep.mubr.f32.mxu0 %v310
        %1389 = vmatmul.mubr.f32.gmra.mxu0 %v309
        %v1390 = vpop.f32.mrf.mxu0
        %v1391 = vadd.f32 %v1182, %v1390
        %v1392 = vpop.f32.mrf.mxu0
        %1393 = vmatprep.mubr.f32.mxu0 %v312
        %1394 = vmatmul.mubr.f32.gmra.mxu0 %v311
        %v1395 = vpop.f32.mrf.mxu0
        %v1396 = vadd.f32 %v1182, %v1395
        %v1397 = vpop.f32.mrf.mxu0
        %1398 = vmatprep.mubr.f32.mxu0 %v314
        %1399 = vmatmul.mubr.f32.gmra.mxu0 %v313
        %v1400 = vpop.f32.mrf.mxu0
        %v1401 = vadd.f32 %v1182, %v1400
        %v1402 = vpop.f32.mrf.mxu0
        %1403 = vmatprep.mubr.f32.mxu0 %v316
        %1404 = vmatmul.mubr.f32.gmra.mxu0 %v315
        %v1405 = vpop.f32.mrf.mxu0
        %v1406 = vadd.f32 %v1182, %v1405
        %v1407 = vpop.f32.mrf.mxu0
        %1408 = vdwg.mxu0
        %1409 = vst [vmem:[%s245] sm:$0xff] %v1251
        %1410 = vst [vmem:[%s245 + $0x8] sm:$0xff] %v1256
        %1411 = vst [vmem:[%s245 + $0x10] sm:$0xff] %v1261
        %1412 = vst [vmem:[%s245 + $0x18] sm:$0xff] %v1266
        %1413 = vst [vmem:[%s245 + $0x20] sm:$0xff] %v1271
        %1414 = vst [vmem:[%s245 + $0x28] sm:$0xff] %v1276
        %1415 = vst [vmem:[%s245 + $0x30] sm:$0xff] %v1281
        %1416 = vst [vmem:[%s245 + $0x38] sm:$0xff] %v1286
        %1417 = vst [vmem:[%s245 + $0x40] sm:$0xff] %v1291
        %1418 = vst [vmem:[%s245 + $0x48] sm:$0xff] %v1296
        %1419 = vst [vmem:[%s245 + $0x50] sm:$0xff] %v1301
        %1420 = vst [vmem:[%s245 + $0x58] sm:$0xff] %v1306
        %1421 = vst [vmem:[%s245 + $0x60] sm:$0xff] %v1311
        %1422 = vst [vmem:[%s245 + $0x68] sm:$0xff] %v1316
        %1423 = vst [vmem:[%s245 + $0x70] sm:$0xff] %v1321
        %1424 = vst [vmem:[%s245 + $0x78] sm:$0xff] %v1326
        %1425 = vst [vmem:[%s245 + $0x80] sm:$0xff] %v1331
        %1426 = vst [vmem:[%s245 + $0x88] sm:$0xff] %v1336
        %1427 = vst [vmem:[%s245 + $0x90] sm:$0xff] %v1341
        %1428 = vst [vmem:[%s245 + $0x98] sm:$0xff] %v1346
        %1429 = vst [vmem:[%s245 + $0xa0] sm:$0xff] %v1351
        %1430 = vst [vmem:[%s245 + $0xa8] sm:$0xff] %v1356
        %1431 = vst [vmem:[%s245 + $0xb0] sm:$0xff] %v1361
        %1432 = vst [vmem:[%s245 + $0xb8] sm:$0xff] %v1366
        %1433 = vst [vmem:[%s245 + $0xc0] sm:$0xff] %v1371
        %1434 = vst [vmem:[%s245 + $0xc8] sm:$0xff] %v1376
        %1435 = vst [vmem:[%s245 + $0xd0] sm:$0xff] %v1381
        %1436 = vst [vmem:[%s245 + $0xd8] sm:$0xff] %v1386
        %1437 = vst [vmem:[%s245 + $0xe0] sm:$0xff] %v1391
        %1438 = vst [vmem:[%s245 + $0xe8] sm:$0xff] %v1396
        %1439 = vst [vmem:[%s245 + $0xf0] sm:$0xff] %v1401
        %1440 = vst [vmem:[%s245 + $0xf8] sm:$0xff] %v1406
        %s1441 = sand.u32 %s159, 1
        %s1442 = scalar_lea.sflag [#allocation3], %s1441
        %s1443 = sand.u32 %s159, 1
        %s1444 = smul.addr %s1443, 256
        %s1445 = scalar_lea.vmem [#allocation2], %s1444
        // Predicated region
        $region45: #{tpu_custom_call.1} parent=43 // pred_check
          %p1446 = pneg %p169
        $region46: #{tpu_custom_call.1} parent=43 // pred_check_branch
          %1448 = sbr.rel (%p1446) target = $region48
        $region47: #{tpu_custom_call.1} parent=43 // pred_region
          %s1449 = smul.u32 32, %s20
          %s1451 = ssub.s32 4096, 4096
          %1452 = vsyncadd %s1442, %s1451
          %s1453 = smul.addr %s1449, 128
          %s1454 = scalar_lea.hbm %s6, %s1453
          %s1455 = sshll.u32 %s1445, 4
          %s1456 = int_to_ptr.vmem [resolvable:$true] %s1455
          %1461 = dma.vmem_to_hbm [thread:$0]  %s1456, 4096, %s1454, %s1442, 128, 128, 8
        $region48: #{tpu_custom_call.1} parent=43 // pred_fallthru
          _
      $region44: #{tpu_custom_call.1} parent=5 // pred_fallthru
        _
      %p1462 = scmp.le.s32.totalorder 2, %s15
      // Predicated region
      $region49: #{tpu_custom_call.1} parent=5 // pred_check
        %p1463 = pneg %p1462
      $region50: #{tpu_custom_call.1} parent=5 // pred_check_branch
        %1465 = sbr.rel (%p1463) target = $region52
      $region51: #{tpu_custom_call.1} parent=5 // pred_region
        %s1466 = ssub.s32 %s15, 2
        // Predicated region
        $region53: #{tpu_custom_call.1} parent=51 // pred_check
          %p1467 = pneg %p175
        $region54: #{tpu_custom_call.1} parent=51 // pred_check_branch
          %1469 = sbr.rel (%p1467) target = $region56
        $region55: #{tpu_custom_call.1} parent=51 // pred_region
          %s1470 = sand.u32 %s160, 1
          %s1471 = scalar_lea.sflag [#allocation3], %s1470
          %s1472 = sand.u32 %s160, 1
          %s1473 = smul.addr %s1472, 256
          %s1474 = scalar_lea.vmem [#allocation2], %s1473
          %1475 = dma.done %s1471, 4096
        $region56: #{tpu_custom_call.1} parent=51 // pred_fallthru
          _
      $region52: #{tpu_custom_call.1} parent=5 // pred_fallthru
        _
    $region6: #{tpu_custom_call.1} parent=1 // loop_footer
      %s19 = sadd.s32 1, %s15
    $region7: #{tpu_custom_call.1} parent=1 // loop_footer_branch
      %14 = sbr.rel target = $region3
    $region8: #{tpu_custom_call.1} parent=1 // loop_exit
      _
    %1476 = vsyncpa [#allocation3], 1
    %s1477 = scalar_lea.sflag [#allocation3], 1
    %1478 = vsyncpa %s1477, 1

</llo_original>
